<compile_context>
chip_gen: v7x
topology: tpu7x:2x2x1
jax: 0.10.0
libtpu: 0.0.40
codegen_flags: <defaults>
</compile_context>

<pallas_src>
import functools
import math

import jax
import jax.numpy as jnp
from jax.experimental import pallas as pl
from jax.experimental.pallas import tpu as pltpu


# ----------------------------------------------------------------------------
# helpers
# ----------------------------------------------------------------------------
def _round_up(x, m):
    return (x + m - 1) // m * m


def _split(dim, max_tile, align):
    """Pick (tile, padded_dim): tile % align == 0, tile <= max_tile, padded % tile == 0."""
    dp = _round_up(dim, align)
    if dp <= max_tile:
        return dp, dp
    n = -(-dp // max_tile)
    while True:
        t = _round_up(-(-dp // n), align)
        if t <= max_tile:
            return t, t * n
        n += 1


# ----------------------------------------------------------------------------
# Fused GEMM kernel: y = act(x @ w + b), bf16 operands, f32 accumulator
# ----------------------------------------------------------------------------
def _mm_kernel(x_ref, w_ref, b_ref, o_ref, acc_ref, *, act):
    @pl.when(pl.program_id(2) == 0)
    def _():
        acc_ref[...] = jnp.zeros_like(acc_ref)

    acc_ref[...] += jnp.dot(x_ref[...], w_ref[...],
                            preferred_element_type=jnp.float32)

    @pl.when(pl.program_id(2) == pl.num_programs(2) - 1)
    def _():
        y = acc_ref[...] + b_ref[...]
        if act == "leaky":
            y = jnp.where(y > 0, y, 0.1 * y)
        elif act == "relu":
            y = jnp.maximum(y, 0.0)
        elif act == "sigmoid":
            y = jax.nn.sigmoid(y)
        o_ref[...] = y.astype(o_ref.dtype)


@functools.lru_cache(maxsize=None)
def _build_gemm(Mp, Kp, Np, tm, tk, tn, act, out_dtype_name):
    out_dtype = jnp.dtype(out_dtype_name)
    # Double-buffered working set + headroom, capped at 32 MiB so the same config
    # fits v7x's 64 MiB physical VMEM as well as v5e/v6e's 128 MiB.
    work = 2 * 2 * (tm * tk + tk * tn)          # bf16 x / w, double-buffered
    work += 2 * tm * tn * out_dtype.itemsize    # output blocks
    work += tm * tn * 4                         # f32 accumulator scratch
    work += 2 * 2 * tn * 4                      # bias stream
    vmem_limit = max(16 << 20, min(int(work * 1.5) + (4 << 20), 32 << 20))

    cost = pl.CostEstimate(
        flops=2 * Mp * Kp * Np,
        transcendentals=Mp * Np if act == "sigmoid" else 0,
        bytes_accessed=2 * (Mp * Kp + Kp * Np) + Mp * Np * out_dtype.itemsize + 4 * Np,
    )

    return pl.pallas_call(
        functools.partial(_mm_kernel, act=act),
        out_shape=jax.ShapeDtypeStruct((Mp, Np), out_dtype),
        grid_spec=pltpu.PrefetchScalarGridSpec(
            num_scalar_prefetch=0,
            grid=(Mp // tm, Np // tn, Kp // tk),
            in_specs=[
                pl.BlockSpec((tm, tk), lambda i, j, k: (i, k)),
                pl.BlockSpec((tk, tn), lambda i, j, k: (k, j)),
                pl.BlockSpec((1, tn), lambda i, j, k: (0, j)),
            ],
            out_specs=pl.BlockSpec((tm, tn), lambda i, j, k: (i, j)),
            scratch_shapes=[pltpu.VMEM((tm, tn), jnp.float32)],
        ),
        compiler_params=pltpu.CompilerParams(
            dimension_semantics=("parallel", "parallel", "arbitrary"),
            vmem_limit_bytes=vmem_limit,
        ),
        cost_estimate=cost,
    )


def matmul_bias_act(x, w, bias, act="none", out_dtype=jnp.float32):
    """act(x @ w + bias).  x:(M,K) w:(K,N) bias:(N,).  MXU in bf16, f32 accumulate."""
    M, K = x.shape
    K2, N = w.shape
    assert K == K2, (K, K2)
    tm, Mp = _split(M, 512, 16)    # 16-aligned second-minor covers bf16 tiles
    tn, Np = _split(N, 512, 128)
    tk, Kp = _split(K, 2048, 128)

    xp = jnp.pad(x.astype(jnp.bfloat16), ((0, Mp - M), (0, Kp - K)))
    wp = jnp.pad(w.astype(jnp.bfloat16), ((0, Kp - K), (0, Np - N)))
    bp = jnp.pad(bias.astype(jnp.float32), (0, Np - N)).reshape(1, Np)

    fn = _build_gemm(Mp, Kp, Np, tm, tk, tn, act, jnp.dtype(out_dtype).name)
    out = fn(xp, wp, bp)
    return out[:M, :N]


# ----------------------------------------------------------------------------
# Lane-dense max-over-views kernel
# ----------------------------------------------------------------------------
def _max_views_kernel(x_ref, o_ref):
    o_ref[...] = jnp.max(x_ref[...], axis=0)


def max_over_views(x):
    """x: (V, R, C) -> (R, C) elementwise max over V.  C is the lane axis."""
    V, R, C = x.shape
    tm, Rp = _split(R, 256, 16)
    xp = jnp.pad(x, ((0, 0), (0, Rp - R), (0, 0)))
    out = pl.pallas_call(
        _max_views_kernel,
        out_shape=jax.ShapeDtypeStruct((Rp, C), x.dtype),
        grid=(Rp // tm,),
        in_specs=[pl.BlockSpec((V, tm, C), lambda i: (0, i, 0))],
        out_specs=pl.BlockSpec((tm, C), lambda i: (i, 0)),
        compiler_params=pltpu.CompilerParams(dimension_semantics=("parallel",)),
    )(xp)
    return out[:R]


# ----------------------------------------------------------------------------
# Conv (bf16 im2col + fused GEMM) / MaxPool
# ----------------------------------------------------------------------------
_BN_SCALE = 1.0 / math.sqrt(1.0 + 1e-5)  # eval-mode BN, init stats (mean=0,var=1,gamma=1,beta=0)


def conv_bn_lrelu(x, w, b, k, pad):
    """x: (B,H,W,Cin) bf16 NHWC; w: (k*k*Cin, Cout) bf16, (ky,kx,cin) K-order, BN folded."""
    B, H, W, C = x.shape
    assert k > 1 or pad == 0  # all 1x1 convs in this net are unpadded
    xp = jnp.pad(x, ((0, 0), (pad, pad), (pad, pad), (0, 0))) if pad else x
    if k == 1:
        patches = xp
    else:
        # TODO(synk): fold the k*k taps into the GEMM reduction grid instead of
        # materializing bf16 im2col patches in HBM.
        cols = [xp[:, ky:ky + H, kx:kx + W, :] for ky in range(k) for kx in range(k)]
        patches = jnp.concatenate(cols, axis=-1)
    Cout = w.shape[1]
    y = matmul_bias_act(patches.reshape(B * H * W, k * k * C), w, b,
                        act="leaky", out_dtype=jnp.bfloat16)
    return y.reshape(B, H, W, Cout)


def maxpool2(x):
    B, H, W, C = x.shape
    return x.reshape(B, H // 2, 2, W // 2, 2, C).max(axis=(2, 4))


# ----------------------------------------------------------------------------
# kornia.warp_perspective / center_crop equivalents (plain JAX glue)
# ----------------------------------------------------------------------------
def warp_perspective_nhwc(img, M, out_h, out_w):
    """Bilinear perspective warp with zero padding.
    TODO(synk): kornia's exact align_corners sub-pixel convention is not reproduced."""
    B, Hs, Ws, C = img.shape
    Minv = jnp.linalg.inv(M)
    ys, xs = jnp.meshgrid(jnp.arange(out_h, dtype=jnp.float32),
                          jnp.arange(out_w, dtype=jnp.float32), indexing="ij")
    denom = Minv[2, 0] * xs + Minv[2, 1] * ys + Minv[2, 2]
    sx = (Minv[0, 0] * xs + Minv[0, 1] * ys + Minv[0, 2]) / denom
    sy = (Minv[1, 0] * xs + Minv[1, 1] * ys + Minv[1, 2]) / denom
    x0 = jnp.floor(sx)
    y0 = jnp.floor(sy)
    wx1 = sx - x0
    wy1 = sy - y0
    wx0 = 1.0 - wx1
    wy0 = 1.0 - wy1

    def gather(yi, xi):
        valid = (yi >= 0) & (yi <= Hs - 1) & (xi >= 0) & (xi <= Ws - 1)
        yc = jnp.clip(yi, 0, Hs - 1).astype(jnp.int32)
        xc = jnp.clip(xi, 0, Ws - 1).astype(jnp.int32)
        v = img[:, yc, xc, :]
        return v * valid[None, :, :, None].astype(img.dtype)

    return (gather(y0, x0) * (wy0 * wx0)[None, :, :, None]
            + gather(y0, x0 + 1) * (wy0 * wx1)[None, :, :, None]
            + gather(y0 + 1, x0) * (wy1 * wx0)[None, :, :, None]
            + gather(y0 + 1, x0 + 1) * (wy1 * wx1)[None, :, :, None])


# ----------------------------------------------------------------------------
# Model configuration (full original sizes + reduced demo config)
# ----------------------------------------------------------------------------
FULL_DARKNET_CFG = [
    ([(3, 64, 5, 2)], True),
    ([(64, 192, 3, 1)], True),
    ([(192, 128, 1, 0), (128, 256, 3, 1), (256, 256, 1, 0), (256, 512, 3, 1)], True),
    ([(512, 256, 1, 0), (256, 512, 3, 1), (512, 256, 1, 0), (256, 512, 3, 1),
      (512, 256, 1, 0), (256, 512, 3, 1), (512, 256, 1, 0), (256, 512, 3, 1),
      (512, 512, 1, 0), (512, 1024, 3, 1)], True),
    ([(1024, 512, 1, 0), (512, 1024, 3, 1), (1024, 512, 1, 0), (512, 1024, 3, 1)], False),
]

FULL_CFG = dict(darknet=FULL_DARKNET_CFG, warp_hw=(204, 306), crop_hw=(192, 288),
                feature_size=20, num_bboxes=2, lin1_out=32, lin2_out=8192)


def make_demo_cfg(div=8):
    """Width/spatial-reduced configuration of the same architecture (for the demo run)."""
    def s(c):
        return c if c == 3 else max(8, c // div)
    dk = [([(s(ci), s(co), k, p) for (ci, co, k, p) in blk], pool)
          for blk, pool in FULL_DARKNET_CFG]
    return dict(darknet=dk, warp_hw=(40, 56), crop_hw=(32, 48),
                feature_size=20, num_bboxes=2, lin1_out=32, lin2_out=1024)


M_MATRICES = jnp.array(
    [[[-0.0692946073, -1.17143003, 164.122408], [-1.33781874e-14, -1.67019853, 234.084846], [-7.00394603e-17, -0.00763146706, 1.0]],
     [[-0.0692636526, -1.17089785, 164.264194], [-1.12965193e-14, -1.66944201, 234.140507], [-5.76795556e-17, -0.00762799727, 1.0]],
     [[-0.0702452787, -1.17762492, 164.369634], [-2.2759572e-14, -1.67903365, 234.318471], [-1.16009632e-16, -0.0076718209, 1.0]],
     [[-0.0694775392, -1.17675499, 164.135286], [-1.19904087e-14, -1.67779415, 234.164782], [-5.7896396e-17, -0.00766615368, 1.0]],
     [[-0.0682085369, -1.16228084, 164.011808], [-1.23234756e-14, -1.6571561, 233.912863], [-6.39679282e-17, -0.00757186452, 1.0]],
     [[-0.0691003275, -1.16814423, 163.997347], [-1.59872116e-14, -1.66551463, 234.087152], [-8.30498864e-17, -0.00761006318, 1.0]]],
    dtype=jnp.float32)


def init_params(key, cfg):
    params = {"darknet": []}
    for block, _pool in cfg["darknet"]:
        blk = []
        for (cin, cout, k, pad) in block:
            key, kw, kb = jax.random.split(key, 3)
            fan_in = cin * k * k
            w = jax.random.normal(kw, (k, k, cin, cout), jnp.float32) * math.sqrt(2.0 / fan_in)
            b = jax.random.normal(kb, (cout,), jnp.float32) * 0.01
            # Fold eval-mode BN scale into weights/bias; store weights in bf16.
            w = (w * _BN_SCALE).reshape(k * k * cin, cout).astype(jnp.bfloat16)  # (ky,kx,cin) K-order
            blk.append((w, b * _BN_SCALE, k, pad))
        params["darknet"].append(blk)

    def linear(lkey, fin, fout):
        k1, k2 = jax.random.split(lkey)
        bound = 1.0 / math.sqrt(fin)
        w = jax.random.uniform(k1, (fin, fout), jnp.float32, -bound, bound).astype(jnp.bfloat16)
        b = jax.random.uniform(k2, (fout,), jnp.float32, -bound, bound)
        return w, b

    ch, cw = cfg["crop_hw"]
    hf, wf = ch // 16, cw // 16                  # 4 maxpool(2) stages
    cf = cfg["darknet"][-1][0][-1][1]            # final channel count
    key, k1, k2, k3 = jax.random.split(key, 4)
    params["lin1"] = linear(k1, hf * wf, cfg["lin1_out"])
    params["lin2"] = linear(k2, cf * cfg["lin1_out"], cfg["lin2_out"])
    params["cls"] = linear(k3, cfg["lin2_out"],
                           cfg["feature_size"] ** 2 * 5 * cfg["num_bboxes"])
    return params


def darknet_forward(params, x, cfg):
    for blk, (_layers, pool) in zip(params["darknet"], cfg["darknet"]):
        for (w, b, k, pad) in blk:
            x = conv_bn_lrelu(x, w, b, k, pad)
        if pool:
            x = maxpool2(x)
    return x  # (6B, Hf, Wf, Cf) bf16


def yo1o_forward(params, images, cfg):
    """images: (B, 6, 3, H, W) float32 -> (B, fs, fs, 5*num_bboxes) float32."""
    B = images.shape[0]
    wh, ww = cfg["warp_hw"]
    ch, cw = cfg["crop_hw"]
    oy, ox = (wh - ch) // 2, (ww - cw) // 2
    views = []
    for i in range(6):
        v = jnp.transpose(images[:, i], (0, 2, 3, 1))            # NCHW -> NHWC
        v = warp_perspective_nhwc(v, M_MATRICES[i], wh, ww)      # kornia.warp_perspective
        v = v[:, oy:oy + ch, ox:ox + cw, :]                      # kornia.center_crop
        views.append(v)
    x = jnp.concatenate(views, axis=0).astype(jnp.bfloat16)      # (6B, ch, cw, 3), shared weights

    feat = darknet_forward(params, x, cfg)                       # (6B, Hf, Wf, Cf) bf16
    Hf, Wf, Cf = feat.shape[1], feat.shape[2], feat.shape[3]

    # Lane-dense max over the 6 views (channels on the 128-lane axis).
    agg = max_over_views(feat.reshape(6, B * Hf * Wf, Cf))       # (B*Hf*Wf, Cf)

    # Per-channel spatial rows for lin1 (PyTorch: agg.view(B, C, Hf*Wf)).
    agg = jnp.transpose(agg.reshape(B, Hf * Wf, Cf), (0, 2, 1)).reshape(B * Cf, Hf * Wf)

    w1, b1 = params["lin1"]
    h = matmul_bias_act(agg, w1, b1, act="relu", out_dtype=jnp.bfloat16)  # Linear+ReLU (Dropout=id)
    h = h.reshape(B, Cf * cfg["lin1_out"])

    w2, b2 = params["lin2"]
    h = matmul_bias_act(h, w2, b2, act="relu", out_dtype=jnp.bfloat16)    # Linear+ReLU (Dropout=id)

    wc, bc = params["cls"]
    boxes = matmul_bias_act(h, wc, bc, act="sigmoid", out_dtype=jnp.float32)  # Linear+Sigmoid
    fs, nb = cfg["feature_size"], cfg["num_bboxes"]
    return boxes.reshape(-1, fs, fs, 5 * nb)


# ----------------------------------------------------------------------------
if __name__ == "__main__":
    # Reduced-size demo config (identical architecture / dataflow; FULL_CFG holds
    # the original Yo1o sizes) so the script completes quickly on TPU and under
    # Pallas interpret mode.
    cfg = make_demo_cfg(div=8)

    key = jax.random.PRNGKey(0)
    kp, kx = jax.random.split(key)
    params = init_params(kp, cfg)
    # PyTorch-style input: (batch, 6 camera views, 3 channels, H, W), NCHW per view.
    images = jax.random.normal(kx, (2, 6, 3, 32, 32), jnp.float32)

    boxes = yo1o_forward(params, images, cfg)
    boxes = jax.block_until_ready(boxes)

    fs, nb = cfg["feature_size"], cfg["num_bboxes"]
    assert boxes.shape == (2, fs, fs, 5 * nb), boxes.shape
    assert boxes.dtype == jnp.float32
    assert bool(jnp.all(jnp.isfinite(boxes)))
    print("KERNEL_OK")
</pallas_src>

<mosaic_0001>
module attributes {stable_mosaic.version = 11 : i64} {
  func.func @_mm_kernel(%arg0: i32, %arg1: i32, %arg2: i32, %arg3: memref<512x128xbf16, #tpu.memory_space<vmem>>, %arg4: memref<128x128xbf16, #tpu.memory_space<vmem>>, %arg5: memref<1x128xf32, #tpu.memory_space<vmem>>, %arg6: memref<512x128xbf16, #tpu.memory_space<vmem>>, %arg7: memref<512x128xf32, #tpu.memory_space<vmem>>) attributes {dimension_semantics = [#tpu.dimension_semantics<parallel>, #tpu.dimension_semantics<parallel>, #tpu.dimension_semantics<arbitrary>], iteration_bounds = array<i64: 36, 1, 1>, scalar_prefetch = 0 : i64, scratch_operands = 1 : i64, tpu.core_type = #tpu.core_type<tc>, window_params = [{transform_indices = @transform_0, window_bounds = array<i64: 512, 128>}, {transform_indices = @transform_1, window_bounds = array<i64: 128, 128>}, {transform_indices = @transform_2, window_bounds = array<i64: 1, 128>}, {transform_indices = @transform_3, window_bounds = array<i64: 512, 128>}]} {
    %c0_i32 = arith.constant 0 : i32
    %0 = arith.cmpi eq, %arg2, %c0_i32 : i32
    %1 = arith.extui %0 : i1 to i32
    %c0_i32_0 = arith.constant 0 : i32
    %2 = arith.cmpi ne, %1, %c0_i32_0 : i32
    scf.if %2 {
      %cst_10 = arith.constant 0.000000e+00 : f32
      %12 = vector.broadcast %cst_10 : f32 to vector<512x128xf32>
      %c0_11 = arith.constant 0 : index
      %c0_12 = arith.constant 0 : index
      %13 = vector.load %arg7[%c0_11, %c0_12] : memref<512x128xf32, #tpu.memory_space<vmem>>, vector<512x128xf32>
      tpu.vector_store %arg7[%c0_11, %c0_12], %12 {strides = array<i32>} : memref<512x128xf32, #tpu.memory_space<vmem>>, vector<512x128xf32>,
    } else {
    }
    %c0 = arith.constant 0 : index
    %c0_1 = arith.constant 0 : index
    %3 = vector.load %arg7[%c0, %c0_1] : memref<512x128xf32, #tpu.memory_space<vmem>>, vector<512x128xf32>
    %c0_2 = arith.constant 0 : index
    %c0_3 = arith.constant 0 : index
    %4 = vector.load %arg3[%c0_2, %c0_3] : memref<512x128xbf16, #tpu.memory_space<vmem>>, vector<512x128xbf16>
    %c0_4 = arith.constant 0 : index
    %c0_5 = arith.constant 0 : index
    %5 = vector.load %arg4[%c0_4, %c0_5] : memref<128x128xbf16, #tpu.memory_space<vmem>>, vector<128x128xbf16>
    %cst = arith.constant dense<0.000000e+00> : vector<512x128xf32>
    %6 = tpu.matmul %4, %5, %cst {dimension_numbers = #tpu.dot_dimension_numbers<[1], [0], [0], [1], [0, 0, 1, 1], [], []>} : vector<512x128xbf16>, vector<128x128xbf16>, vector<512x128xf32> -> vector<512x128xf32>
    %7 = arith.addf %3, %6 : vector<512x128xf32>
    %c0_6 = arith.constant 0 : index
    %c0_7 = arith.constant 0 : index
    %8 = vector.load %arg7[%c0_6, %c0_7] : memref<512x128xf32, #tpu.memory_space<vmem>>, vector<512x128xf32>
    tpu.vector_store %arg7[%c0_6, %c0_7], %7 {strides = array<i32>} : memref<512x128xf32, #tpu.memory_space<vmem>>, vector<512x128xf32>,
    %c0_i32_8 = arith.constant 0 : i32
    %9 = arith.cmpi eq, %arg2, %c0_i32_8 : i32
    %10 = arith.extui %9 : i1 to i32
    %c0_i32_9 = arith.constant 0 : i32
    %11 = arith.cmpi ne, %10, %c0_i32_9 : i32
    scf.if %11 {
      %c0_10 = arith.constant 0 : index
      %c0_11 = arith.constant 0 : index
      %12 = vector.load %arg7[%c0_10, %c0_11] : memref<512x128xf32, #tpu.memory_space<vmem>>, vector<512x128xf32>
      %c0_12 = arith.constant 0 : index
      %c0_13 = arith.constant 0 : index
      %13 = vector.load %arg5[%c0_12, %c0_13] : memref<1x128xf32, #tpu.memory_space<vmem>>, vector<1x128xf32>
      %14 = vector.broadcast %13 : vector<1x128xf32> to vector<512x128xf32>
      %15 = arith.addf %12, %14 : vector<512x128xf32>
      %cst_14 = arith.constant 0.000000e+00 : f32
      %16 = vector.broadcast %cst_14 : f32 to vector<512x128xf32>
      %17 = arith.cmpf ogt, %15, %16 : vector<512x128xf32>
      %cst_15 = arith.constant 1.000000e-01 : f32
      %18 = vector.broadcast %cst_15 : f32 to vector<512x128xf32>
      %19 = arith.mulf %18, %15 : vector<512x128xf32>
      %20 = arith.select %17, %15, %19 : vector<512x128xi1>, vector<512x128xf32>
      %21 = arith.truncf %20 : vector<512x128xf32> to vector<512x128xbf16>
      %c0_16 = arith.constant 0 : index
      %c0_17 = arith.constant 0 : index
      %22 = vector.load %arg6[%c0_16, %c0_17] : memref<512x128xbf16, #tpu.memory_space<vmem>>, vector<512x128xbf16>
      tpu.vector_store %arg6[%c0_16, %c0_17], %21 {strides = array<i32>} : memref<512x128xbf16, #tpu.memory_space<vmem>>, vector<512x128xbf16>,
    } else {
    }
    return
  }
  func.func @transform_0(%arg0: i32, %arg1: i32, %arg2: i32) -> (i32, i32) {
    %c0_i32 = arith.constant 0 : i32
    return %arg0, %arg2 : i32, i32
  }
  func.func @transform_1(%arg0: i32, %arg1: i32, %arg2: i32) -> (i32, i32) {
    %c0_i32 = arith.constant 0 : i32
    return %arg2, %arg1 : i32, i32
  }
  func.func @transform_2(%arg0: i32, %arg1: i32, %arg2: i32) -> (i32, i32) {
    %c0_i32 = arith.constant 0 : i32
    %c0_i32_0 = arith.constant 0 : i32
    return %c0_i32, %arg1 : i32, i32
  }
  func.func @transform_3(%arg0: i32, %arg1: i32, %arg2: i32) -> (i32, i32) {
    %c0_i32 = arith.constant 0 : i32
    return %arg0, %arg1 : i32, i32
  }
}

</mosaic_0001>

<llo_original>
// kernel: tpu_custom_call.1
$region0: #{tpu_custom_call.1}
  #allocation0 [shape = 'u32[]', space=smem, size = 0x4, offset = 0x4, fixed_abs, tag = 'smem constant byte address 0x4 - core index']
  #allocation1 [shape = 'u32[144,128]{1,0:T(1,128)}', space=vmem, size = 0x12000, scoped, tag = 'internal scratch']
  #allocation2 [shape = 'f32[512,128]{1,0:T(8,128)}', space=vmem, size = 0x40000, scoped, tag = 'scratch operand']
  %s0 = inlined_call_operand.hbm [shape: bf16[18432,128], index: 0, kind: input, shape index: {}]
  %s1 = inlined_call_operand.hbm [shape: bf16[128,128], index: 1, kind: input, shape index: {}]
  %s2 = inlined_call_operand.hbm [shape: f32[1,128], index: 2, kind: input, shape index: {}]
  %s3 = inlined_call_operand.hbm [shape: bf16[18432,128], index: 3, kind: output, shape index: {}]
  %s4 = sld [smem:[#allocation0]]
  $region65: #{tpu_custom_call.1} parent=0
    _
  %s6 = ssub.s32 1, %s4
  %s7 = scalar_select 0, %s6, %s4
  $region1: #{tpu_custom_call.1} parent=0
    #allocation3 [shape = 'u8[262144]{0}', space=vmem, size = 0x40000, scoped, tag = 'input window, operand 0']
    #allocation4 [shape = 's32[2]{0}', space=sflag, size = 0x8, scoped, tag = 'scoped memory for tpu_custom_call.1']
    #allocation5 [shape = 's32[2]{0}', space=sflag, size = 0x8, scoped, tag = 'scoped memory for tpu_custom_call.1']
    #allocation6 [shape = 'u8[32768]{0}', space=vmem, size = 0x8000, scoped, tag = 'input window, operand 1, single buffered']
    #allocation7 [shape = 's32[1]{0}', space=sflag, size = 0x4, scoped, tag = 'scoped memory for tpu_custom_call.1']
    #allocation8 [shape = 'u8[512]{0}', space=vmem, size = 0x400, scoped, tag = 'input window, operand 2, single buffered']
    #allocation9 [shape = 'u8[262144]{0}', space=vmem, size = 0x40000, scoped, tag = 'output window, operand 0']
    %8 = vsyncpa [#allocation4], 0
    %s9 = scalar_lea.sflag [#allocation4], 1
    %10 = vsyncpa %s9, 0
    %11 = vsyncpa [#allocation7], 0
    %12 = vsyncpa [#allocation5], 0
    %s13 = scalar_lea.sflag [#allocation5], 1
    %14 = vsyncpa %s13, 0
    loop: start=0, step=1, limit=38
    $region2: #{tpu_custom_call.1} parent=1 // loop_pre_header
      _
    $region3: #{tpu_custom_call.1} parent=1 // loop_header
      %s16 = sphi 0, %s20
      %p17 = scmp.ge.s32.totalorder %s16, 38
      %s23 = sphi 0, %s42
      %s24 = sphi 0, %s38
      %s25 = sphi 0, %s34
      %s26 = sphi 0, %s23
      %s27 = sphi 0, %s24
      %s28 = sphi 0, %s25
      %s29 = sphi 0, %s26
      %s30 = sphi 0, %s27
      %s31 = sphi 0, %s28
      %s47 = sphi 0, %s49
      %s50 = sphi 0, %s47
      %s51 = sphi 0, %s50
      %s67 = sphi 0, %s51
      %s75 = sphi 0, %s77
      %s78 = sphi 0, %s75
      %s79 = sphi 0, %s78
      %s95 = sphi 0, %s79
      %s101 = sphi 0, %s103
      %s104 = sphi 0, %s101
      %s105 = sphi 0, %s104
      %s121 = sphi 0, %s105
      %s129 = sphi 0, %s131
      %s132 = sphi 0, %s129
      %s133 = sphi 0, %s132
      %s149 = sphi 0, %s133
    $region4: #{tpu_custom_call.1} parent=1 // loop_header_branch
      %19 = sbr.rel (%p17) target = $region8
    $region5: #{tpu_custom_call.1} parent=1 // loop_body
      %s21 = ssub.s32 %s16, 1
      %s22 = ssub.s32 %s16, 2
      %s32 = sadd.s32 1, %s25
      %p33 = scmp.ge.s32.totalorder %s32, 1
      %s34 = scalar_select %p33, 0, %s32
      %s35 = sadd.s32 1, %s24
      %s36 = scalar_select %p33, %s35, %s24
      %p37 = scmp.ge.s32.totalorder %s36, 1
      %s38 = scalar_select %p37, 0, %s36
      %s39 = sadd.s32 1, %s23
      %s40 = scalar_select %p37, %s39, %s23
      %p41 = scmp.ge.s32.totalorder %s40, 36
      %s42 = scalar_select %p41, 0, %s40
      %s43 = ssub.s32 %s23, %s42
      %s44 = ssub.s32 %s25, %s34
      %s45 = sor.u32 %s43, %s44
      %p46 = scmp.eq.s32.totalorder %s45, 0
      %s48 = sadd.s32 %s47, 1
      %s49 = scalar_select %p46, %s47, %s48
      %p52 = pneg %p46
      %p53 = scmp.eq.s32.totalorder %s16, 35
      %p54 = por %p52, %p53
      %p55 = scmp.ne.s32.totalorder %s47, %s50
      %p56 = scmp.eq.s32.totalorder %s16, 0
      %p57 = por %p55, %p56
      %p58 = scmp.ne.s32.totalorder %s47, %s50
      %p59 = scmp.eq.s32.totalorder %s21, 35
      %p60 = por %p58, %p59
      %p61 = scmp.ne.s32.totalorder %s50, %s51
      %p62 = scmp.eq.s32.totalorder %s21, 0
      %p63 = por %p61, %p62
      %p64 = scmp.ne.s32.totalorder %s50, %s51
      %p65 = scmp.eq.s32.totalorder %s22, 35
      %p66 = por %p64, %p65
      %p68 = scmp.ne.s32.totalorder %s51, %s67
      %p69 = scmp.eq.s32.totalorder %s22, 0
      %p70 = por %p68, %p69
      %s71 = ssub.s32 %s25, %s34
      %s72 = ssub.s32 %s24, %s38
      %s73 = sor.u32 %s71, %s72
      %p74 = scmp.eq.s32.totalorder %s73, 0
      %s76 = sadd.s32 %s75, 1
      %s77 = scalar_select %p74, %s75, %s76
      %p80 = pneg %p74
      %p81 = scmp.eq.s32.totalorder %s16, 35
      %p82 = por %p80, %p81
      %p83 = scmp.ne.s32.totalorder %s75, %s78
      %p84 = scmp.eq.s32.totalorder %s16, 0
      %p85 = por %p83, %p84
      %p86 = scmp.ne.s32.totalorder %s75, %s78
      %p87 = scmp.eq.s32.totalorder %s21, 35
      %p88 = por %p86, %p87
      %p89 = scmp.ne.s32.totalorder %s78, %s79
      %p90 = scmp.eq.s32.totalorder %s21, 0
      %p91 = por %p89, %p90
      %p92 = scmp.ne.s32.totalorder %s78, %s79
      %p93 = scmp.eq.s32.totalorder %s22, 35
      %p94 = por %p92, %p93
      %p96 = scmp.ne.s32.totalorder %s79, %s95
      %p97 = scmp.eq.s32.totalorder %s22, 0
      %p98 = por %p96, %p97
      %s99 = ssub.s32 %s24, %s38
      %p100 = scmp.eq.s32.totalorder %s99, 0
      %s102 = sadd.s32 %s101, 1
      %s103 = scalar_select %p100, %s101, %s102
      %p106 = pneg %p100
      %p107 = scmp.eq.s32.totalorder %s16, 35
      %p108 = por %p106, %p107
      %p109 = scmp.ne.s32.totalorder %s101, %s104
      %p110 = scmp.eq.s32.totalorder %s16, 0
      %p111 = por %p109, %p110
      %p112 = scmp.ne.s32.totalorder %s101, %s104
      %p113 = scmp.eq.s32.totalorder %s21, 35
      %p114 = por %p112, %p113
      %p115 = scmp.ne.s32.totalorder %s104, %s105
      %p116 = scmp.eq.s32.totalorder %s21, 0
      %p117 = por %p115, %p116
      %p118 = scmp.ne.s32.totalorder %s104, %s105
      %p119 = scmp.eq.s32.totalorder %s22, 35
      %p120 = por %p118, %p119
      %p122 = scmp.ne.s32.totalorder %s105, %s121
      %p123 = scmp.eq.s32.totalorder %s22, 0
      %p124 = por %p122, %p123
      %s125 = ssub.s32 %s23, %s42
      %s126 = ssub.s32 %s24, %s38
      %s127 = sor.u32 %s125, %s126
      %p128 = scmp.eq.s32.totalorder %s127, 0
      %s130 = sadd.s32 %s129, 1
      %s131 = scalar_select %p128, %s129, %s130
      %p134 = pneg %p128
      %p135 = scmp.eq.s32.totalorder %s16, 35
      %p136 = por %p134, %p135
      %p137 = scmp.ne.s32.totalorder %s129, %s132
      %p138 = scmp.eq.s32.totalorder %s16, 0
      %p139 = por %p137, %p138
      %p140 = scmp.ne.s32.totalorder %s129, %s132
      %p141 = scmp.eq.s32.totalorder %s21, 35
      %p142 = por %p140, %p141
      %p143 = scmp.ne.s32.totalorder %s132, %s133
      %p144 = scmp.eq.s32.totalorder %s21, 0
      %p145 = por %p143, %p144
      %p146 = scmp.ne.s32.totalorder %s132, %s133
      %p147 = scmp.eq.s32.totalorder %s22, 35
      %p148 = por %p146, %p147
      %p150 = scmp.ne.s32.totalorder %s133, %s149
      %p151 = scmp.eq.s32.totalorder %s22, 0
      %p152 = por %p150, %p151
      %p153 = scmp.le.s32.totalorder 1, %s16
      %p154 = scmp.lt.s32.totalorder %s16, 37
      %p155 = pnand %p153, %p154
      %p156 = pneg %p155
      // Predicated region
      $region9: #{tpu_custom_call.1} parent=5 // pred_check
        _
      $region10: #{tpu_custom_call.1} parent=5 // pred_check_branch
        %158 = sbr.rel (%p155) target = $region12
      $region11: #{tpu_custom_call.1} parent=5 // pred_region
        %s159 = ssub.s32 %s16, 1
        // Predicated region
        $region13: #{tpu_custom_call.1} parent=11 // pred_check
          %p160 = pneg %p91
        $region14: #{tpu_custom_call.1} parent=11 // pred_check_branch
          %162 = sbr.rel (%p160) target = $region16
        $region15: #{tpu_custom_call.1} parent=11 // pred_region
          %s163 = smul.u32 16, %s28
          %s165 = ssub.s32 1024, 1024
          %166 = vsyncadd [#allocation7], %s165
          %s167 = sadd.s32 %s27, %s163
          %s168 = smul.addr %s167, 64
          %s169 = scalar_lea.hbm %s1, %s168
          %s170 = sshll.u32 [#allocation6], 4
          %s171 = int_to_ptr.vmem [resolvable:$true] %s170
          %176 = dma.hbm_to_vmem [thread:$0]  %s169, 1024, %s171, [#allocation7], 64, 64, 4
        $region16: #{tpu_custom_call.1} parent=11 // pred_fallthru
          _
        // Predicated region
        $region17: #{tpu_custom_call.1} parent=11 // pred_check
          %p177 = pneg %p117
        $region18: #{tpu_custom_call.1} parent=11 // pred_check_branch
          %179 = sbr.rel (%p177) target = $region20
        $region19: #{tpu_custom_call.1} parent=11 // pred_region
          %s181 = ssub.s32 16, 16
          %182 = vsyncadd [#allocation7], %s181
          %s183 = smul.addr %s27, 16
          %s184 = scalar_lea.hbm %s2, %s183
          %s186 = sshll.u32 [#allocation8], 4
          %s187 = int_to_ptr.vmem [resolvable:$true] %s186
          %189 = dma.hbm_to_vmem [thread:$0]  %s184, 16, %s187, [#allocation7]
        $region20: #{tpu_custom_call.1} parent=11 // pred_fallthru
          _
      $region12: #{tpu_custom_call.1} parent=5 // pred_fallthru
        _
      %p190 = scmp.lt.s32.totalorder %s16, 36
      // Predicated region
      $region21: #{tpu_custom_call.1} parent=5 // pred_check
        %p191 = pneg %p190
      $region22: #{tpu_custom_call.1} parent=5 // pred_check_branch
        %193 = sbr.rel (%p191) target = $region24
      $region23: #{tpu_custom_call.1} parent=5 // pred_region
        // Predicated region
        $region25: #{tpu_custom_call.1} parent=23 // pred_check
          %p194 = pneg %p57
        $region26: #{tpu_custom_call.1} parent=23 // pred_check_branch
          %196 = sbr.rel (%p194) target = $region28
        $region27: #{tpu_custom_call.1} parent=23 // pred_region
          %s197 = sand.u32 %s47, 1
          %s198 = scalar_lea.sflag [#allocation4], %s197
          %s199 = sand.u32 %s47, 1
          %s200 = smul.addr %s199, 256
          %s201 = scalar_lea.vmem [#allocation3], %s200
          %s202 = smul.u32 64, %s23
          %s204 = ssub.s32 4096, 4096
          %205 = vsyncadd %s198, %s204
          %s206 = sadd.s32 %s25, %s202
          %s207 = smul.addr %s206, 64
          %s208 = scalar_lea.hbm %s0, %s207
          %s209 = sshll.u32 %s201, 4
          %s210 = int_to_ptr.vmem [resolvable:$true] %s209
          %215 = dma.hbm_to_vmem [thread:$0]  %s208, 4096, %s210, %s198, 64, 64, 4
        $region28: #{tpu_custom_call.1} parent=23 // pred_fallthru
          _
      $region24: #{tpu_custom_call.1} parent=5 // pred_fallthru
        _
      %p216 = scmp.le.s32.totalorder 1, %s16
      %p217 = scmp.lt.s32.totalorder %s16, 37
      %p218 = pnand %p216, %p217
      %p219 = pneg %p218
      // Predicated region
      $region29: #{tpu_custom_call.1} parent=5 // pred_check
        _
      $region30: #{tpu_custom_call.1} parent=5 // pred_check_branch
        %221 = sbr.rel (%p218) target = $region32
      $region31: #{tpu_custom_call.1} parent=5 // pred_region
        %s222 = ssub.s32 %s16, 1
        %s223 = sand.u32 %s50, 1
        %s224 = scalar_lea.sflag [#allocation4], %s223
        %s225 = sand.u32 %s50, 1
        %s226 = smul.addr %s225, 256
        %s227 = scalar_lea.vmem [#allocation3], %s226
        // Predicated region
        $region33: #{tpu_custom_call.1} parent=31 // pred_check
          %p228 = pneg %p63
        $region34: #{tpu_custom_call.1} parent=31 // pred_check_branch
          %230 = sbr.rel (%p228) target = $region36
        $region35: #{tpu_custom_call.1} parent=31 // pred_region
          %231 = dma.done %s224, 4096
        $region36: #{tpu_custom_call.1} parent=31 // pred_fallthru
          _
        // Predicated region
        $region37: #{tpu_custom_call.1} parent=31 // pred_check
          %p232 = pneg %p91
        $region38: #{tpu_custom_call.1} parent=31 // pred_check_branch
          %234 = sbr.rel (%p232) target = $region40
        $region39: #{tpu_custom_call.1} parent=31 // pred_region
          %235 = dma.done [#allocation7], 1024
        $region40: #{tpu_custom_call.1} parent=31 // pred_fallthru
          _
        // Predicated region
        $region41: #{tpu_custom_call.1} parent=31 // pred_check
          %p236 = pneg %p117
        $region42: #{tpu_custom_call.1} parent=31 // pred_check_branch
          %238 = sbr.rel (%p236) target = $region44
        $region43: #{tpu_custom_call.1} parent=31 // pred_region
          %239 = dma.done [#allocation7], 16
        $region44: #{tpu_custom_call.1} parent=31 // pred_fallthru
          _
        %s240 = sand.u32 %s50, 1
        %s241 = scalar_lea.sflag [#allocation4], %s240
        %s242 = sand.u32 %s50, 1
        %s243 = smul.addr %s242, 256
        %s244 = scalar_lea.vmem [#allocation3], %s243
        %p245 = pneg %p63
        %p246 = pneg %p60
        %p247 = pneg %p91
        %p248 = pneg %p88
        %p249 = pneg %p117
        %p250 = pneg %p114
        %p251 = pneg %p145
        %p252 = pneg %p142
        %s253 = sand.u32 %s132, 1
        %s254 = scalar_lea.sflag [#allocation5], %s253
        %s255 = sand.u32 %s132, 1
        %s256 = smul.addr %s255, 256
        %s257 = scalar_lea.vmem [#allocation9], %s256
        %s258 = smul.u32 64, %s26
        %s259 = smul.u32 16, %s28
        %s260 = smul.u32 64, %s26
        %p262 = scmp.eq.s32.totalorder %s28, 0
        // Predicated region
        $region45: #{tpu_custom_call.1} parent=31 // pred_check
          %p263 = pneg %p262
        $region46: #{tpu_custom_call.1} parent=31 // pred_check_branch
          %265 = sbr.rel (%p263) target = $region48
        $region47: #{tpu_custom_call.1} parent=31 // pred_region
          %266 = vst [vmem:[#allocation2] sm:$0xff] 0.0
          %267 = vst [vmem:[#allocation2 + $0x8] sm:$0xff] 0.0
          %268 = vst [vmem:[#allocation2 + $0x10] sm:$0xff] 0.0
          %269 = vst [vmem:[#allocation2 + $0x18] sm:$0xff] 0.0
          %270 = vst [vmem:[#allocation2 + $0x20] sm:$0xff] 0.0
          %271 = vst [vmem:[#allocation2 + $0x28] sm:$0xff] 0.0
          %272 = vst [vmem:[#allocation2 + $0x30] sm:$0xff] 0.0
          %273 = vst [vmem:[#allocation2 + $0x38] sm:$0xff] 0.0
          %274 = vst [vmem:[#allocation2 + $0x40] sm:$0xff] 0.0
          %275 = vst [vmem:[#allocation2 + $0x48] sm:$0xff] 0.0
          %276 = vst [vmem:[#allocation2 + $0x50] sm:$0xff] 0.0
          %277 = vst [vmem:[#allocation2 + $0x58] sm:$0xff] 0.0
          %278 = vst [vmem:[#allocation2 + $0x60] sm:$0xff] 0.0
          %279 = vst [vmem:[#allocation2 + $0x68] sm:$0xff] 0.0
          %280 = vst [vmem:[#allocation2 + $0x70] sm:$0xff] 0.0
          %281 = vst [vmem:[#allocation2 + $0x78] sm:$0xff] 0.0
          %282 = vst [vmem:[#allocation2 + $0x80] sm:$0xff] 0.0
          %283 = vst [vmem:[#allocation2 + $0x88] sm:$0xff] 0.0
          %284 = vst [vmem:[#allocation2 + $0x90] sm:$0xff] 0.0
          %285 = vst [vmem:[#allocation2 + $0x98] sm:$0xff] 0.0
          %286 = vst [vmem:[#allocation2 + $0xa0] sm:$0xff] 0.0
          %287 = vst [vmem:[#allocation2 + $0xa8] sm:$0xff] 0.0
          %288 = vst [vmem:[#allocation2 + $0xb0] sm:$0xff] 0.0
          %289 = vst [vmem:[#allocation2 + $0xb8] sm:$0xff] 0.0
          %290 = vst [vmem:[#allocation2 + $0xc0] sm:$0xff] 0.0
          %291 = vst [vmem:[#allocation2 + $0xc8] sm:$0xff] 0.0
          %292 = vst [vmem:[#allocation2 + $0xd0] sm:$0xff] 0.0
          %293 = vst [vmem:[#allocation2 + $0xd8] sm:$0xff] 0.0
          %294 = vst [vmem:[#allocation2 + $0xe0] sm:$0xff] 0.0
          %295 = vst [vmem:[#allocation2 + $0xe8] sm:$0xff] 0.0
          %296 = vst [vmem:[#allocation2 + $0xf0] sm:$0xff] 0.0
          %297 = vst [vmem:[#allocation2 + $0xf8] sm:$0xff] 0.0
          %298 = vst [vmem:[#allocation2 + $0x100] sm:$0xff] 0.0
          %299 = vst [vmem:[#allocation2 + $0x108] sm:$0xff] 0.0
          %300 = vst [vmem:[#allocation2 + $0x110] sm:$0xff] 0.0
          %301 = vst [vmem:[#allocation2 + $0x118] sm:$0xff] 0.0
          %302 = vst [vmem:[#allocation2 + $0x120] sm:$0xff] 0.0
          %303 = vst [vmem:[#allocation2 + $0x128] sm:$0xff] 0.0
          %304 = vst [vmem:[#allocation2 + $0x130] sm:$0xff] 0.0
          %305 = vst [vmem:[#allocation2 + $0x138] sm:$0xff] 0.0
          %306 = vst [vmem:[#allocation2 + $0x140] sm:$0xff] 0.0
          %307 = vst [vmem:[#allocation2 + $0x148] sm:$0xff] 0.0
          %308 = vst [vmem:[#allocation2 + $0x150] sm:$0xff] 0.0
          %309 = vst [vmem:[#allocation2 + $0x158] sm:$0xff] 0.0
          %310 = vst [vmem:[#allocation2 + $0x160] sm:$0xff] 0.0
          %311 = vst [vmem:[#allocation2 + $0x168] sm:$0xff] 0.0
          %312 = vst [vmem:[#allocation2 + $0x170] sm:$0xff] 0.0
          %313 = vst [vmem:[#allocation2 + $0x178] sm:$0xff] 0.0
          %314 = vst [vmem:[#allocation2 + $0x180] sm:$0xff] 0.0
          %315 = vst [vmem:[#allocation2 + $0x188] sm:$0xff] 0.0
          %316 = vst [vmem:[#allocation2 + $0x190] sm:$0xff] 0.0
          %317 = vst [vmem:[#allocation2 + $0x198] sm:$0xff] 0.0
          %318 = vst [vmem:[#allocation2 + $0x1a0] sm:$0xff] 0.0
          %319 = vst [vmem:[#allocation2 + $0x1a8] sm:$0xff] 0.0
          %320 = vst [vmem:[#allocation2 + $0x1b0] sm:$0xff] 0.0
          %321 = vst [vmem:[#allocation2 + $0x1b8] sm:$0xff] 0.0
          %322 = vst [vmem:[#allocation2 + $0x1c0] sm:$0xff] 0.0
          %323 = vst [vmem:[#allocation2 + $0x1c8] sm:$0xff] 0.0
          %324 = vst [vmem:[#allocation2 + $0x1d0] sm:$0xff] 0.0
          %325 = vst [vmem:[#allocation2 + $0x1d8] sm:$0xff] 0.0
          %326 = vst [vmem:[#allocation2 + $0x1e0] sm:$0xff] 0.0
          %327 = vst [vmem:[#allocation2 + $0x1e8] sm:$0xff] 0.0
          %328 = vst [vmem:[#allocation2 + $0x1f0] sm:$0xff] 0.0
          %329 = vst [vmem:[#allocation2 + $0x1f8] sm:$0xff] 0.0
        $region48: #{tpu_custom_call.1} parent=31 // pred_fallthru
          _
        %v330 = vld [vmem:[#allocation2] sm:$0xff]
        %v331 = vld [vmem:[#allocation2 + $0x8] sm:$0xff]
        %v332 = vld [vmem:[#allocation2 + $0x10] sm:$0xff]
        %v333 = vld [vmem:[#allocation2 + $0x18] sm:$0xff]
        %v334 = vld [vmem:[#allocation2 + $0x20] sm:$0xff]
        %v335 = vld [vmem:[#allocation2 + $0x28] sm:$0xff]
        %v336 = vld [vmem:[#allocation2 + $0x30] sm:$0xff]
        %v337 = vld [vmem:[#allocation2 + $0x38] sm:$0xff]
        %v338 = vld [vmem:[#allocation2 + $0x40] sm:$0xff]
        %v339 = vld [vmem:[#allocation2 + $0x48] sm:$0xff]
        %v340 = vld [vmem:[#allocation2 + $0x50] sm:$0xff]
        %v341 = vld [vmem:[#allocation2 + $0x58] sm:$0xff]
        %v342 = vld [vmem:[#allocation2 + $0x60] sm:$0xff]
        %v343 = vld [vmem:[#allocation2 + $0x68] sm:$0xff]
        %v344 = vld [vmem:[#allocation2 + $0x70] sm:$0xff]
        %v345 = vld [vmem:[#allocation2 + $0x78] sm:$0xff]
        %v346 = vld [vmem:[#allocation2 + $0x80] sm:$0xff]
        %v347 = vld [vmem:[#allocation2 + $0x88] sm:$0xff]
        %v348 = vld [vmem:[#allocation2 + $0x90] sm:$0xff]
        %v349 = vld [vmem:[#allocation2 + $0x98] sm:$0xff]
        %v350 = vld [vmem:[#allocation2 + $0xa0] sm:$0xff]
        %v351 = vld [vmem:[#allocation2 + $0xa8] sm:$0xff]
        %v352 = vld [vmem:[#allocation2 + $0xb0] sm:$0xff]
        %v353 = vld [vmem:[#allocation2 + $0xb8] sm:$0xff]
        %v354 = vld [vmem:[#allocation2 + $0xc0] sm:$0xff]
        %v355 = vld [vmem:[#allocation2 + $0xc8] sm:$0xff]
        %v356 = vld [vmem:[#allocation2 + $0xd0] sm:$0xff]
        %v357 = vld [vmem:[#allocation2 + $0xd8] sm:$0xff]
        %v358 = vld [vmem:[#allocation2 + $0xe0] sm:$0xff]
        %v359 = vld [vmem:[#allocation2 + $0xe8] sm:$0xff]
        %v360 = vld [vmem:[#allocation2 + $0xf0] sm:$0xff]
        %v361 = vld [vmem:[#allocation2 + $0xf8] sm:$0xff]
        %v362 = vld [vmem:[#allocation2 + $0x100] sm:$0xff]
        %v363 = vld [vmem:[#allocation2 + $0x108] sm:$0xff]
        %v364 = vld [vmem:[#allocation2 + $0x110] sm:$0xff]
        %v365 = vld [vmem:[#allocation2 + $0x118] sm:$0xff]
        %v366 = vld [vmem:[#allocation2 + $0x120] sm:$0xff]
        %v367 = vld [vmem:[#allocation2 + $0x128] sm:$0xff]
        %v368 = vld [vmem:[#allocation2 + $0x130] sm:$0xff]
        %v369 = vld [vmem:[#allocation2 + $0x138] sm:$0xff]
        %v370 = vld [vmem:[#allocation2 + $0x140] sm:$0xff]
        %v371 = vld [vmem:[#allocation2 + $0x148] sm:$0xff]
        %v372 = vld [vmem:[#allocation2 + $0x150] sm:$0xff]
        %v373 = vld [vmem:[#allocation2 + $0x158] sm:$0xff]
        %v374 = vld [vmem:[#allocation2 + $0x160] sm:$0xff]
        %v375 = vld [vmem:[#allocation2 + $0x168] sm:$0xff]
        %v376 = vld [vmem:[#allocation2 + $0x170] sm:$0xff]
        %v377 = vld [vmem:[#allocation2 + $0x178] sm:$0xff]
        %v378 = vld [vmem:[#allocation2 + $0x180] sm:$0xff]
        %v379 = vld [vmem:[#allocation2 + $0x188] sm:$0xff]
        %v380 = vld [vmem:[#allocation2 + $0x190] sm:$0xff]
        %v381 = vld [vmem:[#allocation2 + $0x198] sm:$0xff]
        %v382 = vld [vmem:[#allocation2 + $0x1a0] sm:$0xff]
        %v383 = vld [vmem:[#allocation2 + $0x1a8] sm:$0xff]
        %v384 = vld [vmem:[#allocation2 + $0x1b0] sm:$0xff]
        %v385 = vld [vmem:[#allocation2 + $0x1b8] sm:$0xff]
        %v386 = vld [vmem:[#allocation2 + $0x1c0] sm:$0xff]
        %v387 = vld [vmem:[#allocation2 + $0x1c8] sm:$0xff]
        %v388 = vld [vmem:[#allocation2 + $0x1d0] sm:$0xff]
        %v389 = vld [vmem:[#allocation2 + $0x1d8] sm:$0xff]
        %v390 = vld [vmem:[#allocation2 + $0x1e0] sm:$0xff]
        %v391 = vld [vmem:[#allocation2 + $0x1e8] sm:$0xff]
        %v392 = vld [vmem:[#allocation2 + $0x1f0] sm:$0xff]
        %v393 = vld [vmem:[#allocation2 + $0x1f8] sm:$0xff]
        %v394 = vld [vmem:[%s227] sm:$0xf]
        %v395 = vld [vmem:[%s227 + $0x4] sm:$0xf]
        %v396 = vld [vmem:[%s227 + $0x8] sm:$0xf]
        %v397 = vld [vmem:[%s227 + $0xc] sm:$0xf]
        %v398 = vld [vmem:[%s227 + $0x10] sm:$0xf]
        %v399 = vld [vmem:[%s227 + $0x14] sm:$0xf]
        %v400 = vld [vmem:[%s227 + $0x18] sm:$0xf]
        %v401 = vld [vmem:[%s227 + $0x1c] sm:$0xf]
        %v402 = vld [vmem:[%s227 + $0x20] sm:$0xf]
        %v403 = vld [vmem:[%s227 + $0x24] sm:$0xf]
        %v404 = vld [vmem:[%s227 + $0x28] sm:$0xf]
        %v405 = vld [vmem:[%s227 + $0x2c] sm:$0xf]
        %v406 = vld [vmem:[%s227 + $0x30] sm:$0xf]
        %v407 = vld [vmem:[%s227 + $0x34] sm:$0xf]
        %v408 = vld [vmem:[%s227 + $0x38] sm:$0xf]
        %v409 = vld [vmem:[%s227 + $0x3c] sm:$0xf]
        %v410 = vld [vmem:[%s227 + $0x40] sm:$0xf]
        %v411 = vld [vmem:[%s227 + $0x44] sm:$0xf]
        %v412 = vld [vmem:[%s227 + $0x48] sm:$0xf]
        %v413 = vld [vmem:[%s227 + $0x4c] sm:$0xf]
        %v414 = vld [vmem:[%s227 + $0x50] sm:$0xf]
        %v415 = vld [vmem:[%s227 + $0x54] sm:$0xf]
        %v416 = vld [vmem:[%s227 + $0x58] sm:$0xf]
        %v417 = vld [vmem:[%s227 + $0x5c] sm:$0xf]
        %v418 = vld [vmem:[%s227 + $0x60] sm:$0xf]
        %v419 = vld [vmem:[%s227 + $0x64] sm:$0xf]
        %v420 = vld [vmem:[%s227 + $0x68] sm:$0xf]
        %v421 = vld [vmem:[%s227 + $0x6c] sm:$0xf]
        %v422 = vld [vmem:[%s227 + $0x70] sm:$0xf]
        %v423 = vld [vmem:[%s227 + $0x74] sm:$0xf]
        %v424 = vld [vmem:[%s227 + $0x78] sm:$0xf]
        %v425 = vld [vmem:[%s227 + $0x7c] sm:$0xf]
        %v426 = vld [vmem:[%s227 + $0x80] sm:$0xf]
        %v427 = vld [vmem:[%s227 + $0x84] sm:$0xf]
        %v428 = vld [vmem:[%s227 + $0x88] sm:$0xf]
        %v429 = vld [vmem:[%s227 + $0x8c] sm:$0xf]
        %v430 = vld [vmem:[%s227 + $0x90] sm:$0xf]
        %v431 = vld [vmem:[%s227 + $0x94] sm:$0xf]
        %v432 = vld [vmem:[%s227 + $0x98] sm:$0xf]
        %v433 = vld [vmem:[%s227 + $0x9c] sm:$0xf]
        %v434 = vld [vmem:[%s227 + $0xa0] sm:$0xf]
        %v435 = vld [vmem:[%s227 + $0xa4] sm:$0xf]
        %v436 = vld [vmem:[%s227 + $0xa8] sm:$0xf]
        %v437 = vld [vmem:[%s227 + $0xac] sm:$0xf]
        %v438 = vld [vmem:[%s227 + $0xb0] sm:$0xf]
        %v439 = vld [vmem:[%s227 + $0xb4] sm:$0xf]
        %v440 = vld [vmem:[%s227 + $0xb8] sm:$0xf]
        %v441 = vld [vmem:[%s227 + $0xbc] sm:$0xf]
        %v442 = vld [vmem:[%s227 + $0xc0] sm:$0xf]
        %v443 = vld [vmem:[%s227 + $0xc4] sm:$0xf]
        %v444 = vld [vmem:[%s227 + $0xc8] sm:$0xf]
        %v445 = vld [vmem:[%s227 + $0xcc] sm:$0xf]
        %v446 = vld [vmem:[%s227 + $0xd0] sm:$0xf]
        %v447 = vld [vmem:[%s227 + $0xd4] sm:$0xf]
        %v448 = vld [vmem:[%s227 + $0xd8] sm:$0xf]
        %v449 = vld [vmem:[%s227 + $0xdc] sm:$0xf]
        %v450 = vld [vmem:[%s227 + $0xe0] sm:$0xf]
        %v451 = vld [vmem:[%s227 + $0xe4] sm:$0xf]
        %v452 = vld [vmem:[%s227 + $0xe8] sm:$0xf]
        %v453 = vld [vmem:[%s227 + $0xec] sm:$0xf]
        %v454 = vld [vmem:[%s227 + $0xf0] sm:$0xf]
        %v455 = vld [vmem:[%s227 + $0xf4] sm:$0xf]
        %v456 = vld [vmem:[%s227 + $0xf8] sm:$0xf]
        %v457 = vld [vmem:[%s227 + $0xfc] sm:$0xf]
        %v458 = vld [vmem:[#allocation6] sm:$0xf]
        %v459 = vld [vmem:[#allocation6 + $0x4] sm:$0xf]
        %v460 = vld [vmem:[#allocation6 + $0x8] sm:$0xf]
        %v461 = vld [vmem:[#allocation6 + $0xc] sm:$0xf]
        %v462 = vld [vmem:[#allocation6 + $0x10] sm:$0xf]
        %v463 = vld [vmem:[#allocation6 + $0x14] sm:$0xf]
        %v464 = vld [vmem:[#allocation6 + $0x18] sm:$0xf]
        %v465 = vld [vmem:[#allocation6 + $0x1c] sm:$0xf]
        %v466 = vld [vmem:[#allocation6 + $0x20] sm:$0xf]
        %v467 = vld [vmem:[#allocation6 + $0x24] sm:$0xf]
        %v468 = vld [vmem:[#allocation6 + $0x28] sm:$0xf]
        %v469 = vld [vmem:[#allocation6 + $0x2c] sm:$0xf]
        %v470 = vld [vmem:[#allocation6 + $0x30] sm:$0xf]
        %v471 = vld [vmem:[#allocation6 + $0x34] sm:$0xf]
        %v472 = vld [vmem:[#allocation6 + $0x38] sm:$0xf]
        %v473 = vld [vmem:[#allocation6 + $0x3c] sm:$0xf]
        %v538 = vunpack.c.l.b16 %v394
        %v539 = vunpack.c.l.b16 %v395
        %v540 = vunpack.c.l.b16 %v396
        %v541 = vunpack.c.l.b16 %v397
        %v542 = vunpack.c.l.b16 %v398
        %v543 = vunpack.c.l.b16 %v399
        %v544 = vunpack.c.l.b16 %v400
        %v545 = vunpack.c.l.b16 %v401
        %v546 = vunpack.c.l.b16 %v402
        %v547 = vunpack.c.l.b16 %v403
        %v548 = vunpack.c.l.b16 %v404
        %v549 = vunpack.c.l.b16 %v405
        %v550 = vunpack.c.l.b16 %v406
        %v551 = vunpack.c.l.b16 %v407
        %v552 = vunpack.c.l.b16 %v408
        %v553 = vunpack.c.l.b16 %v409
        %v554 = vunpack.c.l.b16 %v410
        %v555 = vunpack.c.l.b16 %v411
        %v556 = vunpack.c.l.b16 %v412
        %v557 = vunpack.c.l.b16 %v413
        %v558 = vunpack.c.l.b16 %v414
        %v559 = vunpack.c.l.b16 %v415
        %v560 = vunpack.c.l.b16 %v416
        %v561 = vunpack.c.l.b16 %v417
        %v562 = vunpack.c.l.b16 %v418
        %v563 = vunpack.c.l.b16 %v419
        %v564 = vunpack.c.l.b16 %v420
        %v565 = vunpack.c.l.b16 %v421
        %v566 = vunpack.c.l.b16 %v422
        %v567 = vunpack.c.l.b16 %v423
        %v568 = vunpack.c.l.b16 %v424
        %v569 = vunpack.c.l.b16 %v425
        %v570 = vunpack.c.l.b16 %v426
        %v571 = vunpack.c.l.b16 %v427
        %v572 = vunpack.c.l.b16 %v428
        %v573 = vunpack.c.l.b16 %v429
        %v574 = vunpack.c.l.b16 %v430
        %v575 = vunpack.c.l.b16 %v431
        %v576 = vunpack.c.l.b16 %v432
        %v577 = vunpack.c.l.b16 %v433
        %v578 = vunpack.c.l.b16 %v434
        %v579 = vunpack.c.l.b16 %v435
        %v580 = vunpack.c.l.b16 %v436
        %v581 = vunpack.c.l.b16 %v437
        %v582 = vunpack.c.l.b16 %v438
        %v583 = vunpack.c.l.b16 %v439
        %v584 = vunpack.c.l.b16 %v440
        %v585 = vunpack.c.l.b16 %v441
        %v586 = vunpack.c.l.b16 %v442
        %v587 = vunpack.c.l.b16 %v443
        %v588 = vunpack.c.l.b16 %v444
        %v589 = vunpack.c.l.b16 %v445
        %v590 = vunpack.c.l.b16 %v446
        %v591 = vunpack.c.l.b16 %v447
        %v592 = vunpack.c.l.b16 %v448
        %v593 = vunpack.c.l.b16 %v449
        %v594 = vunpack.c.l.b16 %v450
        %v595 = vunpack.c.l.b16 %v451
        %v596 = vunpack.c.l.b16 %v452
        %v597 = vunpack.c.l.b16 %v453
        %v598 = vunpack.c.l.b16 %v454
        %v599 = vunpack.c.l.b16 %v455
        %v600 = vunpack.c.l.b16 %v456
        %v601 = vunpack.c.l.b16 %v457
        %v602 = vpack.c.b16 %v539, %v538
        %v603 = vpack.c.b16 %v541, %v540
        %v604 = vpack.c.b16 %v543, %v542
        %v605 = vpack.c.b16 %v545, %v544
        %v606 = vpack.c.b16 %v547, %v546
        %v607 = vpack.c.b16 %v549, %v548
        %v608 = vpack.c.b16 %v551, %v550
        %v609 = vpack.c.b16 %v553, %v552
        %v610 = vpack.c.b16 %v555, %v554
        %v611 = vpack.c.b16 %v557, %v556
        %v612 = vpack.c.b16 %v559, %v558
        %v613 = vpack.c.b16 %v561, %v560
        %v614 = vpack.c.b16 %v563, %v562
        %v615 = vpack.c.b16 %v565, %v564
        %v616 = vpack.c.b16 %v567, %v566
        %v617 = vpack.c.b16 %v569, %v568
        %v618 = vpack.c.b16 %v571, %v570
        %v619 = vpack.c.b16 %v573, %v572
        %v620 = vpack.c.b16 %v575, %v574
        %v621 = vpack.c.b16 %v577, %v576
        %v622 = vpack.c.b16 %v579, %v578
        %v623 = vpack.c.b16 %v581, %v580
        %v624 = vpack.c.b16 %v583, %v582
        %v625 = vpack.c.b16 %v585, %v584
        %v626 = vpack.c.b16 %v587, %v586
        %v627 = vpack.c.b16 %v589, %v588
        %v628 = vpack.c.b16 %v591, %v590
        %v629 = vpack.c.b16 %v593, %v592
        %v630 = vpack.c.b16 %v595, %v594
        %v631 = vpack.c.b16 %v597, %v596
        %v632 = vpack.c.b16 %v599, %v598
        %v633 = vpack.c.b16 %v601, %v600
        %v682 = vunpack.c.l.b16 %v458
        %v683 = vunpack.c.l.b16 %v459
        %v684 = vunpack.c.l.b16 %v460
        %v685 = vunpack.c.l.b16 %v461
        %v686 = vunpack.c.l.b16 %v462
        %v687 = vunpack.c.l.b16 %v463
        %v688 = vunpack.c.l.b16 %v464
        %v689 = vunpack.c.l.b16 %v465
        %v690 = vunpack.c.l.b16 %v466
        %v691 = vunpack.c.l.b16 %v467
        %v692 = vunpack.c.l.b16 %v468
        %v693 = vunpack.c.l.b16 %v469
        %v694 = vunpack.c.l.b16 %v470
        %v695 = vunpack.c.l.b16 %v471
        %v696 = vunpack.c.l.b16 %v472
        %v697 = vunpack.c.l.b16 %v473
        %v698 = vpack.c.b16 %v683, %v682
        %v699 = vpack.c.b16 %v685, %v684
        %v700 = vpack.c.b16 %v687, %v686
        %v701 = vpack.c.b16 %v689, %v688
        %v702 = vpack.c.b16 %v691, %v690
        %v703 = vpack.c.b16 %v693, %v692
        %v704 = vpack.c.b16 %v695, %v694
        %v705 = vpack.c.b16 %v697, %v696
        %714 = vmatprep.subr.bf16.mxu0 0
        %715 = vmatpush1.bf16.msra.mxu0 %v698
        %716 = vmatprep.subr.bf16.mxu0 0
        %717 = vmatpush1.bf16.msra.mxu0 %v699
        %718 = vmatprep.subr.bf16.mxu0 0
        %719 = vmatpush1.bf16.msra.mxu0 %v700
        %720 = vmatprep.subr.bf16.mxu0 0
        %721 = vmatpush1.bf16.msra.mxu0 %v701
        %722 = vmatprep.subr.bf16.mxu0 0
        %723 = vmatpush1.bf16.msra.mxu0 %v702
        %724 = vmatprep.subr.bf16.mxu0 0
        %725 = vmatpush1.bf16.msra.mxu0 %v703
        %726 = vmatprep.subr.bf16.mxu0 0
        %727 = vmatpush1.bf16.msra.mxu0 %v704
        %728 = vmatprep.subr.bf16.mxu0 0
        %729 = vmatpush1.bf16.msra.mxu0 %v705
        %730 = vmatprep.subr.bf16.mxu0 0
        %731 = vmatpush1.bf16.msra.mxu0 0
        %732 = vmatprep.subr.bf16.mxu0 0
        %733 = vmatpush1.bf16.msra.mxu0 0
        %734 = vmatprep.subr.bf16.mxu0 0
        %735 = vmatpush1.bf16.msra.mxu0 0
        %736 = vmatprep.subr.bf16.mxu0 0
        %737 = vmatpush1.bf16.msra.mxu0 0
        %738 = vmatprep.subr.bf16.mxu0 0
        %739 = vmatpush1.bf16.msra.mxu0 0
        %740 = vmatprep.subr.bf16.mxu0 0
        %741 = vmatpush1.bf16.msra.mxu0 0
        %742 = vmatprep.subr.bf16.mxu0 0
        %743 = vmatpush1.bf16.msra.mxu0 0
        %744 = vmatprep.subr.bf16.mxu0 0
        %745 = vmatpush1.bf16.msra.mxu0 0
        %746 = vmatprep.mubr.bf16.mxu0 0
        %747 = vmatmul.mubr.bf16.gmra.mrb[0].mxu0 %v602
        %v748 = vpop.f32.mrb[0].mxu0
        %v749 = vadd.f32 0.0, %v748
        %v750 = vpop.f32.mrb[0].mxu0
        %v751 = vpop.f32.mrb[0].mxu0
        %v752 = vadd.f32 0.0, %v751
        %v753 = vpop.f32.mrb[0].mxu0
        %754 = vmatprep.mubr.bf16.mxu0 0
        %755 = vmatmul.mubr.bf16.gmra.mrb[0].mxu0 %v603
        %v756 = vpop.f32.mrb[0].mxu0
        %v757 = vadd.f32 0.0, %v756
        %v758 = vpop.f32.mrb[0].mxu0
        %v759 = vpop.f32.mrb[0].mxu0
        %v760 = vadd.f32 0.0, %v759
        %v761 = vpop.f32.mrb[0].mxu0
        %762 = vmatprep.mubr.bf16.mxu0 0
        %763 = vmatmul.mubr.bf16.gmra.mrb[0].mxu0 %v604
        %v764 = vpop.f32.mrb[0].mxu0
        %v765 = vadd.f32 0.0, %v764
        %v766 = vpop.f32.mrb[0].mxu0
        %v767 = vpop.f32.mrb[0].mxu0
        %v768 = vadd.f32 0.0, %v767
        %v769 = vpop.f32.mrb[0].mxu0
        %770 = vmatprep.mubr.bf16.mxu0 0
        %771 = vmatmul.mubr.bf16.gmra.mrb[0].mxu0 %v605
        %v772 = vpop.f32.mrb[0].mxu0
        %v773 = vadd.f32 0.0, %v772
        %v774 = vpop.f32.mrb[0].mxu0
        %v775 = vpop.f32.mrb[0].mxu0
        %v776 = vadd.f32 0.0, %v775
        %v777 = vpop.f32.mrb[0].mxu0
        %778 = vmatprep.mubr.bf16.mxu0 0
        %779 = vmatmul.mubr.bf16.gmra.mrb[0].mxu0 %v606
        %v780 = vpop.f32.mrb[0].mxu0
        %v781 = vadd.f32 0.0, %v780
        %v782 = vpop.f32.mrb[0].mxu0
        %v783 = vpop.f32.mrb[0].mxu0
        %v784 = vadd.f32 0.0, %v783
        %v785 = vpop.f32.mrb[0].mxu0
        %786 = vmatprep.mubr.bf16.mxu0 0
        %787 = vmatmul.mubr.bf16.gmra.mrb[0].mxu0 %v607
        %v788 = vpop.f32.mrb[0].mxu0
        %v789 = vadd.f32 0.0, %v788
        %v790 = vpop.f32.mrb[0].mxu0
        %v791 = vpop.f32.mrb[0].mxu0
        %v792 = vadd.f32 0.0, %v791
        %v793 = vpop.f32.mrb[0].mxu0
        %794 = vmatprep.mubr.bf16.mxu0 0
        %795 = vmatmul.mubr.bf16.gmra.mrb[0].mxu0 %v608
        %v796 = vpop.f32.mrb[0].mxu0
        %v797 = vadd.f32 0.0, %v796
        %v798 = vpop.f32.mrb[0].mxu0
        %v799 = vpop.f32.mrb[0].mxu0
        %v800 = vadd.f32 0.0, %v799
        %v801 = vpop.f32.mrb[0].mxu0
        %802 = vmatprep.mubr.bf16.mxu0 0
        %803 = vmatmul.mubr.bf16.gmra.mrb[0].mxu0 %v609
        %v804 = vpop.f32.mrb[0].mxu0
        %v805 = vadd.f32 0.0, %v804
        %v806 = vpop.f32.mrb[0].mxu0
        %v807 = vpop.f32.mrb[0].mxu0
        %v808 = vadd.f32 0.0, %v807
        %v809 = vpop.f32.mrb[0].mxu0
        %810 = vmatprep.mubr.bf16.mxu0 0
        %811 = vmatmul.mubr.bf16.gmra.mrb[0].mxu0 %v610
        %v812 = vpop.f32.mrb[0].mxu0
        %v813 = vadd.f32 0.0, %v812
        %v814 = vpop.f32.mrb[0].mxu0
        %v815 = vpop.f32.mrb[0].mxu0
        %v816 = vadd.f32 0.0, %v815
        %v817 = vpop.f32.mrb[0].mxu0
        %818 = vmatprep.mubr.bf16.mxu0 0
        %819 = vmatmul.mubr.bf16.gmra.mrb[0].mxu0 %v611
        %v820 = vpop.f32.mrb[0].mxu0
        %v821 = vadd.f32 0.0, %v820
        %v822 = vpop.f32.mrb[0].mxu0
        %v823 = vpop.f32.mrb[0].mxu0
        %v824 = vadd.f32 0.0, %v823
        %v825 = vpop.f32.mrb[0].mxu0
        %826 = vmatprep.mubr.bf16.mxu0 0
        %827 = vmatmul.mubr.bf16.gmra.mrb[0].mxu0 %v612
        %v828 = vpop.f32.mrb[0].mxu0
        %v829 = vadd.f32 0.0, %v828
        %v830 = vpop.f32.mrb[0].mxu0
        %v831 = vpop.f32.mrb[0].mxu0
        %v832 = vadd.f32 0.0, %v831
        %v833 = vpop.f32.mrb[0].mxu0
        %834 = vmatprep.mubr.bf16.mxu0 0
        %835 = vmatmul.mubr.bf16.gmra.mrb[0].mxu0 %v613
        %v836 = vpop.f32.mrb[0].mxu0
        %v837 = vadd.f32 0.0, %v836
        %v838 = vpop.f32.mrb[0].mxu0
        %v839 = vpop.f32.mrb[0].mxu0
        %v840 = vadd.f32 0.0, %v839
        %v841 = vpop.f32.mrb[0].mxu0
        %842 = vmatprep.mubr.bf16.mxu0 0
        %843 = vmatmul.mubr.bf16.gmra.mrb[0].mxu0 %v614
        %v844 = vpop.f32.mrb[0].mxu0
        %v845 = vadd.f32 0.0, %v844
        %v846 = vpop.f32.mrb[0].mxu0
        %v847 = vpop.f32.mrb[0].mxu0
        %v848 = vadd.f32 0.0, %v847
        %v849 = vpop.f32.mrb[0].mxu0
        %850 = vmatprep.mubr.bf16.mxu0 0
        %851 = vmatmul.mubr.bf16.gmra.mrb[0].mxu0 %v615
        %v852 = vpop.f32.mrb[0].mxu0
        %v853 = vadd.f32 0.0, %v852
        %v854 = vpop.f32.mrb[0].mxu0
        %v855 = vpop.f32.mrb[0].mxu0
        %v856 = vadd.f32 0.0, %v855
        %v857 = vpop.f32.mrb[0].mxu0
        %858 = vmatprep.mubr.bf16.mxu0 0
        %859 = vmatmul.mubr.bf16.gmra.mrb[0].mxu0 %v616
        %v860 = vpop.f32.mrb[0].mxu0
        %v861 = vadd.f32 0.0, %v860
        %v862 = vpop.f32.mrb[0].mxu0
        %v863 = vpop.f32.mrb[0].mxu0
        %v864 = vadd.f32 0.0, %v863
        %v865 = vpop.f32.mrb[0].mxu0
        %866 = vmatprep.mubr.bf16.mxu0 0
        %867 = vmatmul.mubr.bf16.gmra.mrb[0].mxu0 %v617
        %v868 = vpop.f32.mrb[0].mxu0
        %v869 = vadd.f32 0.0, %v868
        %v870 = vpop.f32.mrb[0].mxu0
        %v871 = vpop.f32.mrb[0].mxu0
        %v872 = vadd.f32 0.0, %v871
        %v873 = vpop.f32.mrb[0].mxu0
        %874 = vmatprep.mubr.bf16.mxu0 0
        %875 = vmatmul.mubr.bf16.gmra.mrb[0].mxu0 %v618
        %v876 = vpop.f32.mrb[0].mxu0
        %v877 = vadd.f32 0.0, %v876
        %v878 = vpop.f32.mrb[0].mxu0
        %v879 = vpop.f32.mrb[0].mxu0
        %v880 = vadd.f32 0.0, %v879
        %v881 = vpop.f32.mrb[0].mxu0
        %882 = vmatprep.mubr.bf16.mxu0 0
        %883 = vmatmul.mubr.bf16.gmra.mrb[0].mxu0 %v619
        %v884 = vpop.f32.mrb[0].mxu0
        %v885 = vadd.f32 0.0, %v884
        %v886 = vpop.f32.mrb[0].mxu0
        %v887 = vpop.f32.mrb[0].mxu0
        %v888 = vadd.f32 0.0, %v887
        %v889 = vpop.f32.mrb[0].mxu0
        %890 = vmatprep.mubr.bf16.mxu0 0
        %891 = vmatmul.mubr.bf16.gmra.mrb[0].mxu0 %v620
        %v892 = vpop.f32.mrb[0].mxu0
        %v893 = vadd.f32 0.0, %v892
        %v894 = vpop.f32.mrb[0].mxu0
        %v895 = vpop.f32.mrb[0].mxu0
        %v896 = vadd.f32 0.0, %v895
        %v897 = vpop.f32.mrb[0].mxu0
        %898 = vmatprep.mubr.bf16.mxu0 0
        %899 = vmatmul.mubr.bf16.gmra.mrb[0].mxu0 %v621
        %v900 = vpop.f32.mrb[0].mxu0
        %v901 = vadd.f32 0.0, %v900
        %v902 = vpop.f32.mrb[0].mxu0
        %v903 = vpop.f32.mrb[0].mxu0
        %v904 = vadd.f32 0.0, %v903
        %v905 = vpop.f32.mrb[0].mxu0
        %906 = vmatprep.mubr.bf16.mxu0 0
        %907 = vmatmul.mubr.bf16.gmra.mrb[0].mxu0 %v622
        %v908 = vpop.f32.mrb[0].mxu0
        %v909 = vadd.f32 0.0, %v908
        %v910 = vpop.f32.mrb[0].mxu0
        %v911 = vpop.f32.mrb[0].mxu0
        %v912 = vadd.f32 0.0, %v911
        %v913 = vpop.f32.mrb[0].mxu0
        %914 = vmatprep.mubr.bf16.mxu0 0
        %915 = vmatmul.mubr.bf16.gmra.mrb[0].mxu0 %v623
        %v916 = vpop.f32.mrb[0].mxu0
        %v917 = vadd.f32 0.0, %v916
        %v918 = vpop.f32.mrb[0].mxu0
        %v919 = vpop.f32.mrb[0].mxu0
        %v920 = vadd.f32 0.0, %v919
        %v921 = vpop.f32.mrb[0].mxu0
        %922 = vmatprep.mubr.bf16.mxu0 0
        %923 = vmatmul.mubr.bf16.gmra.mrb[0].mxu0 %v624
        %v924 = vpop.f32.mrb[0].mxu0
        %v925 = vadd.f32 0.0, %v924
        %v926 = vpop.f32.mrb[0].mxu0
        %v927 = vpop.f32.mrb[0].mxu0
        %v928 = vadd.f32 0.0, %v927
        %v929 = vpop.f32.mrb[0].mxu0
        %930 = vmatprep.mubr.bf16.mxu0 0
        %931 = vmatmul.mubr.bf16.gmra.mrb[0].mxu0 %v625
        %v932 = vpop.f32.mrb[0].mxu0
        %v933 = vadd.f32 0.0, %v932
        %v934 = vpop.f32.mrb[0].mxu0
        %v935 = vpop.f32.mrb[0].mxu0
        %v936 = vadd.f32 0.0, %v935
        %v937 = vpop.f32.mrb[0].mxu0
        %938 = vmatprep.mubr.bf16.mxu0 0
        %939 = vmatmul.mubr.bf16.gmra.mrb[0].mxu0 %v626
        %v940 = vpop.f32.mrb[0].mxu0
        %v941 = vadd.f32 0.0, %v940
        %v942 = vpop.f32.mrb[0].mxu0
        %v943 = vpop.f32.mrb[0].mxu0
        %v944 = vadd.f32 0.0, %v943
        %v945 = vpop.f32.mrb[0].mxu0
        %946 = vmatprep.mubr.bf16.mxu0 0
        %947 = vmatmul.mubr.bf16.gmra.mrb[0].mxu0 %v627
        %v948 = vpop.f32.mrb[0].mxu0
        %v949 = vadd.f32 0.0, %v948
        %v950 = vpop.f32.mrb[0].mxu0
        %v951 = vpop.f32.mrb[0].mxu0
        %v952 = vadd.f32 0.0, %v951
        %v953 = vpop.f32.mrb[0].mxu0
        %954 = vmatprep.mubr.bf16.mxu0 0
        %955 = vmatmul.mubr.bf16.gmra.mrb[0].mxu0 %v628
        %v956 = vpop.f32.mrb[0].mxu0
        %v957 = vadd.f32 0.0, %v956
        %v958 = vpop.f32.mrb[0].mxu0
        %v959 = vpop.f32.mrb[0].mxu0
        %v960 = vadd.f32 0.0, %v959
        %v961 = vpop.f32.mrb[0].mxu0
        %962 = vmatprep.mubr.bf16.mxu0 0
        %963 = vmatmul.mubr.bf16.gmra.mrb[0].mxu0 %v629
        %v964 = vpop.f32.mrb[0].mxu0
        %v965 = vadd.f32 0.0, %v964
        %v966 = vpop.f32.mrb[0].mxu0
        %v967 = vpop.f32.mrb[0].mxu0
        %v968 = vadd.f32 0.0, %v967
        %v969 = vpop.f32.mrb[0].mxu0
        %970 = vmatprep.mubr.bf16.mxu0 0
        %971 = vmatmul.mubr.bf16.gmra.mrb[0].mxu0 %v630
        %v972 = vpop.f32.mrb[0].mxu0
        %v973 = vadd.f32 0.0, %v972
        %v974 = vpop.f32.mrb[0].mxu0
        %v975 = vpop.f32.mrb[0].mxu0
        %v976 = vadd.f32 0.0, %v975
        %v977 = vpop.f32.mrb[0].mxu0
        %978 = vmatprep.mubr.bf16.mxu0 0
        %979 = vmatmul.mubr.bf16.gmra.mrb[0].mxu0 %v631
        %v980 = vpop.f32.mrb[0].mxu0
        %v981 = vadd.f32 0.0, %v980
        %v982 = vpop.f32.mrb[0].mxu0
        %v983 = vpop.f32.mrb[0].mxu0
        %v984 = vadd.f32 0.0, %v983
        %v985 = vpop.f32.mrb[0].mxu0
        %986 = vmatprep.mubr.bf16.mxu0 0
        %987 = vmatmul.mubr.bf16.gmra.mrb[0].mxu0 %v632
        %v988 = vpop.f32.mrb[0].mxu0
        %v989 = vadd.f32 0.0, %v988
        %v990 = vpop.f32.mrb[0].mxu0
        %v991 = vpop.f32.mrb[0].mxu0
        %v992 = vadd.f32 0.0, %v991
        %v993 = vpop.f32.mrb[0].mxu0
        %994 = vmatprep.mubr.bf16.mxu0 0
        %995 = vmatmul.mubr.bf16.gmra.mrb[0].mxu0 %v633
        %v996 = vpop.f32.mrb[0].mxu0
        %v997 = vadd.f32 0.0, %v996
        %v998 = vpop.f32.mrb[0].mxu0
        %v999 = vpop.f32.mrb[0].mxu0
        %v1000 = vadd.f32 0.0, %v999
        %v1001 = vpop.f32.mrb[0].mxu0
        %1002 = vdwg.mxu0
        %v1003 = vadd.f32 %v330, %v749
        %v1004 = vadd.f32 %v331, %v752
        %v1005 = vadd.f32 %v332, %v757
        %v1006 = vadd.f32 %v333, %v760
        %v1007 = vadd.f32 %v334, %v765
        %v1008 = vadd.f32 %v335, %v768
        %v1009 = vadd.f32 %v336, %v773
        %v1010 = vadd.f32 %v337, %v776
        %v1011 = vadd.f32 %v338, %v781
        %v1012 = vadd.f32 %v339, %v784
        %v1013 = vadd.f32 %v340, %v789
        %v1014 = vadd.f32 %v341, %v792
        %v1015 = vadd.f32 %v342, %v797
        %v1016 = vadd.f32 %v343, %v800
        %v1017 = vadd.f32 %v344, %v805
        %v1018 = vadd.f32 %v345, %v808
        %v1019 = vadd.f32 %v346, %v813
        %v1020 = vadd.f32 %v347, %v816
        %v1021 = vadd.f32 %v348, %v821
        %v1022 = vadd.f32 %v349, %v824
        %v1023 = vadd.f32 %v350, %v829
        %v1024 = vadd.f32 %v351, %v832
        %v1025 = vadd.f32 %v352, %v837
        %v1026 = vadd.f32 %v353, %v840
        %v1027 = vadd.f32 %v354, %v845
        %v1028 = vadd.f32 %v355, %v848
        %v1029 = vadd.f32 %v356, %v853
        %v1030 = vadd.f32 %v357, %v856
        %v1031 = vadd.f32 %v358, %v861
        %v1032 = vadd.f32 %v359, %v864
        %v1033 = vadd.f32 %v360, %v869
        %v1034 = vadd.f32 %v361, %v872
        %v1035 = vadd.f32 %v362, %v877
        %v1036 = vadd.f32 %v363, %v880
        %v1037 = vadd.f32 %v364, %v885
        %v1038 = vadd.f32 %v365, %v888
        %v1039 = vadd.f32 %v366, %v893
        %v1040 = vadd.f32 %v367, %v896
        %v1041 = vadd.f32 %v368, %v901
        %v1042 = vadd.f32 %v369, %v904
        %v1043 = vadd.f32 %v370, %v909
        %v1044 = vadd.f32 %v371, %v912
        %v1045 = vadd.f32 %v372, %v917
        %v1046 = vadd.f32 %v373, %v920
        %v1047 = vadd.f32 %v374, %v925
        %v1048 = vadd.f32 %v375, %v928
        %v1049 = vadd.f32 %v376, %v933
        %v1050 = vadd.f32 %v377, %v936
        %v1051 = vadd.f32 %v378, %v941
        %v1052 = vadd.f32 %v379, %v944
        %v1053 = vadd.f32 %v380, %v949
        %v1054 = vadd.f32 %v381, %v952
        %v1055 = vadd.f32 %v382, %v957
        %v1056 = vadd.f32 %v383, %v960
        %v1057 = vadd.f32 %v384, %v965
        %v1058 = vadd.f32 %v385, %v968
        %v1059 = vadd.f32 %v386, %v973
        %v1060 = vadd.f32 %v387, %v976
        %v1061 = vadd.f32 %v388, %v981
        %v1062 = vadd.f32 %v389, %v984
        %v1063 = vadd.f32 %v390, %v989
        %v1064 = vadd.f32 %v391, %v992
        %v1065 = vadd.f32 %v392, %v997
        %v1066 = vadd.f32 %v393, %v1000
        %1067 = vst [vmem:[#allocation2] sm:$0xff] %v1003
        %1068 = vst [vmem:[#allocation2 + $0x8] sm:$0xff] %v1004
        %1069 = vst [vmem:[#allocation2 + $0x10] sm:$0xff] %v1005
        %1070 = vst [vmem:[#allocation2 + $0x18] sm:$0xff] %v1006
        %1071 = vst [vmem:[#allocation2 + $0x20] sm:$0xff] %v1007
        %1072 = vst [vmem:[#allocation2 + $0x28] sm:$0xff] %v1008
        %1073 = vst [vmem:[#allocation2 + $0x30] sm:$0xff] %v1009
        %1074 = vst [vmem:[#allocation2 + $0x38] sm:$0xff] %v1010
        %1075 = vst [vmem:[#allocation2 + $0x40] sm:$0xff] %v1011
        %1076 = vst [vmem:[#allocation2 + $0x48] sm:$0xff] %v1012
        %1077 = vst [vmem:[#allocation2 + $0x50] sm:$0xff] %v1013
        %1078 = vst [vmem:[#allocation2 + $0x58] sm:$0xff] %v1014
        %1079 = vst [vmem:[#allocation2 + $0x60] sm:$0xff] %v1015
        %1080 = vst [vmem:[#allocation2 + $0x68] sm:$0xff] %v1016
        %1081 = vst [vmem:[#allocation2 + $0x70] sm:$0xff] %v1017
        %1082 = vst [vmem:[#allocation2 + $0x78] sm:$0xff] %v1018
        %1083 = vst [vmem:[#allocation2 + $0x80] sm:$0xff] %v1019
        %1084 = vst [vmem:[#allocation2 + $0x88] sm:$0xff] %v1020
        %1085 = vst [vmem:[#allocation2 + $0x90] sm:$0xff] %v1021
        %1086 = vst [vmem:[#allocation2 + $0x98] sm:$0xff] %v1022
        %1087 = vst [vmem:[#allocation2 + $0xa0] sm:$0xff] %v1023
        %1088 = vst [vmem:[#allocation2 + $0xa8] sm:$0xff] %v1024
        %1089 = vst [vmem:[#allocation2 + $0xb0] sm:$0xff] %v1025
        %1090 = vst [vmem:[#allocation2 + $0xb8] sm:$0xff] %v1026
        %1091 = vst [vmem:[#allocation2 + $0xc0] sm:$0xff] %v1027
        %1092 = vst [vmem:[#allocation2 + $0xc8] sm:$0xff] %v1028
        %1093 = vst [vmem:[#allocation2 + $0xd0] sm:$0xff] %v1029
        %1094 = vst [vmem:[#allocation2 + $0xd8] sm:$0xff] %v1030
        %1095 = vst [vmem:[#allocation2 + $0xe0] sm:$0xff] %v1031
        %1096 = vst [vmem:[#allocation2 + $0xe8] sm:$0xff] %v1032
        %1097 = vst [vmem:[#allocation2 + $0xf0] sm:$0xff] %v1033
        %1098 = vst [vmem:[#allocation2 + $0xf8] sm:$0xff] %v1034
        %1099 = vst [vmem:[#allocation2 + $0x100] sm:$0xff] %v1035
        %1100 = vst [vmem:[#allocation2 + $0x108] sm:$0xff] %v1036
        %1101 = vst [vmem:[#allocation2 + $0x110] sm:$0xff] %v1037
        %1102 = vst [vmem:[#allocation2 + $0x118] sm:$0xff] %v1038
        %1103 = vst [vmem:[#allocation2 + $0x120] sm:$0xff] %v1039
        %1104 = vst [vmem:[#allocation2 + $0x128] sm:$0xff] %v1040
        %1105 = vst [vmem:[#allocation2 + $0x130] sm:$0xff] %v1041
        %1106 = vst [vmem:[#allocation2 + $0x138] sm:$0xff] %v1042
        %1107 = vst [vmem:[#allocation2 + $0x140] sm:$0xff] %v1043
        %1108 = vst [vmem:[#allocation2 + $0x148] sm:$0xff] %v1044
        %1109 = vst [vmem:[#allocation2 + $0x150] sm:$0xff] %v1045
        %1110 = vst [vmem:[#allocation2 + $0x158] sm:$0xff] %v1046
        %1111 = vst [vmem:[#allocation2 + $0x160] sm:$0xff] %v1047
        %1112 = vst [vmem:[#allocation2 + $0x168] sm:$0xff] %v1048
        %1113 = vst [vmem:[#allocation2 + $0x170] sm:$0xff] %v1049
        %1114 = vst [vmem:[#allocation2 + $0x178] sm:$0xff] %v1050
        %1115 = vst [vmem:[#allocation2 + $0x180] sm:$0xff] %v1051
        %1116 = vst [vmem:[#allocation2 + $0x188] sm:$0xff] %v1052
        %1117 = vst [vmem:[#allocation2 + $0x190] sm:$0xff] %v1053
        %1118 = vst [vmem:[#allocation2 + $0x198] sm:$0xff] %v1054
        %1119 = vst [vmem:[#allocation2 + $0x1a0] sm:$0xff] %v1055
        %1120 = vst [vmem:[#allocation2 + $0x1a8] sm:$0xff] %v1056
        %1121 = vst [vmem:[#allocation2 + $0x1b0] sm:$0xff] %v1057
        %1122 = vst [vmem:[#allocation2 + $0x1b8] sm:$0xff] %v1058
        %1123 = vst [vmem:[#allocation2 + $0x1c0] sm:$0xff] %v1059
        %1124 = vst [vmem:[#allocation2 + $0x1c8] sm:$0xff] %v1060
        %1125 = vst [vmem:[#allocation2 + $0x1d0] sm:$0xff] %v1061
        %1126 = vst [vmem:[#allocation2 + $0x1d8] sm:$0xff] %v1062
        %1127 = vst [vmem:[#allocation2 + $0x1e0] sm:$0xff] %v1063
        %1128 = vst [vmem:[#allocation2 + $0x1e8] sm:$0xff] %v1064
        %1129 = vst [vmem:[#allocation2 + $0x1f0] sm:$0xff] %v1065
        %1130 = vst [vmem:[#allocation2 + $0x1f8] sm:$0xff] %v1066
        // Predicated region
        $region49: #{tpu_custom_call.1} parent=31 // pred_check
          %p1131 = pneg %p262
        $region50: #{tpu_custom_call.1} parent=31 // pred_check_branch
          %1133 = sbr.rel (%p1131) target = $region52
        $region51: #{tpu_custom_call.1} parent=31 // pred_region
          %v1134 = vld [vmem:[#allocation2] sm:$0xff]
          %v1135 = vld [vmem:[#allocation2 + $0x8] sm:$0xff]
          %v1136 = vld [vmem:[#allocation2 + $0x10] sm:$0xff]
          %v1137 = vld [vmem:[#allocation2 + $0x18] sm:$0xff]
          %v1138 = vld [vmem:[#allocation2 + $0x20] sm:$0xff]
          %v1139 = vld [vmem:[#allocation2 + $0x28] sm:$0xff]
          %v1140 = vld [vmem:[#allocation2 + $0x30] sm:$0xff]
          %v1141 = vld [vmem:[#allocation2 + $0x38] sm:$0xff]
          %v1142 = vld [vmem:[#allocation2 + $0x40] sm:$0xff]
          %v1143 = vld [vmem:[#allocation2 + $0x48] sm:$0xff]
          %v1144 = vld [vmem:[#allocation2 + $0x50] sm:$0xff]
          %v1145 = vld [vmem:[#allocation2 + $0x58] sm:$0xff]
          %v1146 = vld [vmem:[#allocation2 + $0x60] sm:$0xff]
          %v1147 = vld [vmem:[#allocation2 + $0x68] sm:$0xff]
          %v1148 = vld [vmem:[#allocation2 + $0x70] sm:$0xff]
          %v1149 = vld [vmem:[#allocation2 + $0x78] sm:$0xff]
          %v1150 = vld [vmem:[#allocation2 + $0x80] sm:$0xff]
          %v1151 = vld [vmem:[#allocation2 + $0x88] sm:$0xff]
          %v1152 = vld [vmem:[#allocation2 + $0x90] sm:$0xff]
          %v1153 = vld [vmem:[#allocation2 + $0x98] sm:$0xff]
          %v1154 = vld [vmem:[#allocation2 + $0xa0] sm:$0xff]
          %v1155 = vld [vmem:[#allocation2 + $0xa8] sm:$0xff]
          %v1156 = vld [vmem:[#allocation2 + $0xb0] sm:$0xff]
          %v1157 = vld [vmem:[#allocation2 + $0xb8] sm:$0xff]
          %v1158 = vld [vmem:[#allocation2 + $0xc0] sm:$0xff]
          %v1159 = vld [vmem:[#allocation2 + $0xc8] sm:$0xff]
          %v1160 = vld [vmem:[#allocation2 + $0xd0] sm:$0xff]
          %v1161 = vld [vmem:[#allocation2 + $0xd8] sm:$0xff]
          %v1162 = vld [vmem:[#allocation2 + $0xe0] sm:$0xff]
          %v1163 = vld [vmem:[#allocation2 + $0xe8] sm:$0xff]
          %v1164 = vld [vmem:[#allocation2 + $0xf0] sm:$0xff]
          %v1165 = vld [vmem:[#allocation2 + $0xf8] sm:$0xff]
          %v1166 = vld [vmem:[#allocation2 + $0x100] sm:$0xff]
          %v1167 = vld [vmem:[#allocation2 + $0x108] sm:$0xff]
          %v1168 = vld [vmem:[#allocation2 + $0x110] sm:$0xff]
          %v1169 = vld [vmem:[#allocation2 + $0x118] sm:$0xff]
          %v1170 = vld [vmem:[#allocation2 + $0x120] sm:$0xff]
          %v1171 = vld [vmem:[#allocation2 + $0x128] sm:$0xff]
          %v1172 = vld [vmem:[#allocation2 + $0x130] sm:$0xff]
          %v1173 = vld [vmem:[#allocation2 + $0x138] sm:$0xff]
          %v1174 = vld [vmem:[#allocation2 + $0x140] sm:$0xff]
          %v1175 = vld [vmem:[#allocation2 + $0x148] sm:$0xff]
          %v1176 = vld [vmem:[#allocation2 + $0x150] sm:$0xff]
          %v1177 = vld [vmem:[#allocation2 + $0x158] sm:$0xff]
          %v1178 = vld [vmem:[#allocation2 + $0x160] sm:$0xff]
          %v1179 = vld [vmem:[#allocation2 + $0x168] sm:$0xff]
          %v1180 = vld [vmem:[#allocation2 + $0x170] sm:$0xff]
          %v1181 = vld [vmem:[#allocation2 + $0x178] sm:$0xff]
          %v1182 = vld [vmem:[#allocation2 + $0x180] sm:$0xff]
          %v1183 = vld [vmem:[#allocation2 + $0x188] sm:$0xff]
          %v1184 = vld [vmem:[#allocation2 + $0x190] sm:$0xff]
          %v1185 = vld [vmem:[#allocation2 + $0x198] sm:$0xff]
          %v1186 = vld [vmem:[#allocation2 + $0x1a0] sm:$0xff]
          %v1187 = vld [vmem:[#allocation2 + $0x1a8] sm:$0xff]
          %v1188 = vld [vmem:[#allocation2 + $0x1b0] sm:$0xff]
          %v1189 = vld [vmem:[#allocation2 + $0x1b8] sm:$0xff]
          %v1190 = vld [vmem:[#allocation2 + $0x1c0] sm:$0xff]
          %v1191 = vld [vmem:[#allocation2 + $0x1c8] sm:$0xff]
          %v1192 = vld [vmem:[#allocation2 + $0x1d0] sm:$0xff]
          %v1193 = vld [vmem:[#allocation2 + $0x1d8] sm:$0xff]
          %v1194 = vld [vmem:[#allocation2 + $0x1e0] sm:$0xff]
          %v1195 = vld [vmem:[#allocation2 + $0x1e8] sm:$0xff]
          %v1196 = vld [vmem:[#allocation2 + $0x1f0] sm:$0xff]
          %v1197 = vld [vmem:[#allocation2 + $0x1f8] sm:$0xff]
          %v1198 = vld [vmem:[#allocation8] sm:$0x1]
          %v1200 = vlaneseq
          %v1201 = vshrl.u32 %v1200, 7
          %v1202 = vsub.s32 0, %v1201
          %v1203 = vrot.slane %v1198, %v1202
          %v1205 = vadd.f32 %v1134, %v1203
          %v1206 = vadd.f32 %v1135, %v1203
          %v1207 = vadd.f32 %v1136, %v1203
          %v1208 = vadd.f32 %v1137, %v1203
          %v1209 = vadd.f32 %v1138, %v1203
          %v1210 = vadd.f32 %v1139, %v1203
          %v1211 = vadd.f32 %v1140, %v1203
          %v1212 = vadd.f32 %v1141, %v1203
          %v1213 = vadd.f32 %v1142, %v1203
          %v1214 = vadd.f32 %v1143, %v1203
          %v1215 = vadd.f32 %v1144, %v1203
          %v1216 = vadd.f32 %v1145, %v1203
          %v1217 = vadd.f32 %v1146, %v1203
          %v1218 = vadd.f32 %v1147, %v1203
          %v1219 = vadd.f32 %v1148, %v1203
          %v1220 = vadd.f32 %v1149, %v1203
          %v1221 = vadd.f32 %v1150, %v1203
          %v1222 = vadd.f32 %v1151, %v1203
          %v1223 = vadd.f32 %v1152, %v1203
          %v1224 = vadd.f32 %v1153, %v1203
          %v1225 = vadd.f32 %v1154, %v1203
          %v1226 = vadd.f32 %v1155, %v1203
          %v1227 = vadd.f32 %v1156, %v1203
          %v1228 = vadd.f32 %v1157, %v1203
          %v1229 = vadd.f32 %v1158, %v1203
          %v1230 = vadd.f32 %v1159, %v1203
          %v1231 = vadd.f32 %v1160, %v1203
          %v1232 = vadd.f32 %v1161, %v1203
          %v1233 = vadd.f32 %v1162, %v1203
          %v1234 = vadd.f32 %v1163, %v1203
          %v1235 = vadd.f32 %v1164, %v1203
          %v1236 = vadd.f32 %v1165, %v1203
          %v1237 = vadd.f32 %v1166, %v1203
          %v1238 = vadd.f32 %v1167, %v1203
          %v1239 = vadd.f32 %v1168, %v1203
          %v1240 = vadd.f32 %v1169, %v1203
          %v1241 = vadd.f32 %v1170, %v1203
          %v1242 = vadd.f32 %v1171, %v1203
          %v1243 = vadd.f32 %v1172, %v1203
          %v1244 = vadd.f32 %v1173, %v1203
          %v1245 = vadd.f32 %v1174, %v1203
          %v1246 = vadd.f32 %v1175, %v1203
          %v1247 = vadd.f32 %v1176, %v1203
          %v1248 = vadd.f32 %v1177, %v1203
          %v1249 = vadd.f32 %v1178, %v1203
          %v1250 = vadd.f32 %v1179, %v1203
          %v1251 = vadd.f32 %v1180, %v1203
          %v1252 = vadd.f32 %v1181, %v1203
          %v1253 = vadd.f32 %v1182, %v1203
          %v1254 = vadd.f32 %v1183, %v1203
          %v1255 = vadd.f32 %v1184, %v1203
          %v1256 = vadd.f32 %v1185, %v1203
          %v1257 = vadd.f32 %v1186, %v1203
          %v1258 = vadd.f32 %v1187, %v1203
          %v1259 = vadd.f32 %v1188, %v1203
          %v1260 = vadd.f32 %v1189, %v1203
          %v1261 = vadd.f32 %v1190, %v1203
          %v1262 = vadd.f32 %v1191, %v1203
          %v1263 = vadd.f32 %v1192, %v1203
          %v1264 = vadd.f32 %v1193, %v1203
          %v1265 = vadd.f32 %v1194, %v1203
          %v1266 = vadd.f32 %v1195, %v1203
          %v1267 = vadd.f32 %v1196, %v1203
          %v1268 = vadd.f32 %v1197, %v1203
          %vm1269 = vcmp.gt.f32.partialorder %v1205, 0.0
          %vm1270 = vcmp.gt.f32.partialorder %v1206, 0.0
          %vm1271 = vcmp.gt.f32.partialorder %v1207, 0.0
          %vm1272 = vcmp.gt.f32.partialorder %v1208, 0.0
          %vm1273 = vcmp.gt.f32.partialorder %v1209, 0.0
          %vm1274 = vcmp.gt.f32.partialorder %v1210, 0.0
          %vm1275 = vcmp.gt.f32.partialorder %v1211, 0.0
          %vm1276 = vcmp.gt.f32.partialorder %v1212, 0.0
          %vm1277 = vcmp.gt.f32.partialorder %v1213, 0.0
          %vm1278 = vcmp.gt.f32.partialorder %v1214, 0.0
          %vm1279 = vcmp.gt.f32.partialorder %v1215, 0.0
          %vm1280 = vcmp.gt.f32.partialorder %v1216, 0.0
          %vm1281 = vcmp.gt.f32.partialorder %v1217, 0.0
          %vm1282 = vcmp.gt.f32.partialorder %v1218, 0.0
          %vm1283 = vcmp.gt.f32.partialorder %v1219, 0.0
          %vm1284 = vcmp.gt.f32.partialorder %v1220, 0.0
          %vm1285 = vcmp.gt.f32.partialorder %v1221, 0.0
          %vm1286 = vcmp.gt.f32.partialorder %v1222, 0.0
          %vm1287 = vcmp.gt.f32.partialorder %v1223, 0.0
          %vm1288 = vcmp.gt.f32.partialorder %v1224, 0.0
          %vm1289 = vcmp.gt.f32.partialorder %v1225, 0.0
          %vm1290 = vcmp.gt.f32.partialorder %v1226, 0.0
          %vm1291 = vcmp.gt.f32.partialorder %v1227, 0.0
          %vm1292 = vcmp.gt.f32.partialorder %v1228, 0.0
          %vm1293 = vcmp.gt.f32.partialorder %v1229, 0.0
          %vm1294 = vcmp.gt.f32.partialorder %v1230, 0.0
          %vm1295 = vcmp.gt.f32.partialorder %v1231, 0.0
          %vm1296 = vcmp.gt.f32.partialorder %v1232, 0.0
          %vm1297 = vcmp.gt.f32.partialorder %v1233, 0.0
          %vm1298 = vcmp.gt.f32.partialorder %v1234, 0.0
          %vm1299 = vcmp.gt.f32.partialorder %v1235, 0.0
          %vm1300 = vcmp.gt.f32.partialorder %v1236, 0.0
          %vm1301 = vcmp.gt.f32.partialorder %v1237, 0.0
          %vm1302 = vcmp.gt.f32.partialorder %v1238, 0.0
          %vm1303 = vcmp.gt.f32.partialorder %v1239, 0.0
          %vm1304 = vcmp.gt.f32.partialorder %v1240, 0.0
          %vm1305 = vcmp.gt.f32.partialorder %v1241, 0.0
          %vm1306 = vcmp.gt.f32.partialorder %v1242, 0.0
          %vm1307 = vcmp.gt.f32.partialorder %v1243, 0.0
          %vm1308 = vcmp.gt.f32.partialorder %v1244, 0.0
          %vm1309 = vcmp.gt.f32.partialorder %v1245, 0.0
          %vm1310 = vcmp.gt.f32.partialorder %v1246, 0.0
          %vm1311 = vcmp.gt.f32.partialorder %v1247, 0.0
          %vm1312 = vcmp.gt.f32.partialorder %v1248, 0.0
          %vm1313 = vcmp.gt.f32.partialorder %v1249, 0.0
          %vm1314 = vcmp.gt.f32.partialorder %v1250, 0.0
          %vm1315 = vcmp.gt.f32.partialorder %v1251, 0.0
          %vm1316 = vcmp.gt.f32.partialorder %v1252, 0.0
          %vm1317 = vcmp.gt.f32.partialorder %v1253, 0.0
          %vm1318 = vcmp.gt.f32.partialorder %v1254, 0.0
          %vm1319 = vcmp.gt.f32.partialorder %v1255, 0.0
          %vm1320 = vcmp.gt.f32.partialorder %v1256, 0.0
          %vm1321 = vcmp.gt.f32.partialorder %v1257, 0.0
          %vm1322 = vcmp.gt.f32.partialorder %v1258, 0.0
          %vm1323 = vcmp.gt.f32.partialorder %v1259, 0.0
          %vm1324 = vcmp.gt.f32.partialorder %v1260, 0.0
          %vm1325 = vcmp.gt.f32.partialorder %v1261, 0.0
          %vm1326 = vcmp.gt.f32.partialorder %v1262, 0.0
          %vm1327 = vcmp.gt.f32.partialorder %v1263, 0.0
          %vm1328 = vcmp.gt.f32.partialorder %v1264, 0.0
          %vm1329 = vcmp.gt.f32.partialorder %v1265, 0.0
          %vm1330 = vcmp.gt.f32.partialorder %v1266, 0.0
          %vm1331 = vcmp.gt.f32.partialorder %v1267, 0.0
          %vm1332 = vcmp.gt.f32.partialorder %v1268, 0.0
          %v1333 = vmul.f32 %v1205, 0.1
          %v1334 = vmul.f32 %v1206, 0.1
          %v1335 = vmul.f32 %v1207, 0.1
          %v1336 = vmul.f32 %v1208, 0.1
          %v1337 = vmul.f32 %v1209, 0.1
          %v1338 = vmul.f32 %v1210, 0.1
          %v1339 = vmul.f32 %v1211, 0.1
          %v1340 = vmul.f32 %v1212, 0.1
          %v1341 = vmul.f32 %v1213, 0.1
          %v1342 = vmul.f32 %v1214, 0.1
          %v1343 = vmul.f32 %v1215, 0.1
          %v1344 = vmul.f32 %v1216, 0.1
          %v1345 = vmul.f32 %v1217, 0.1
          %v1346 = vmul.f32 %v1218, 0.1
          %v1347 = vmul.f32 %v1219, 0.1
          %v1348 = vmul.f32 %v1220, 0.1
          %v1349 = vmul.f32 %v1221, 0.1
          %v1350 = vmul.f32 %v1222, 0.1
          %v1351 = vmul.f32 %v1223, 0.1
          %v1352 = vmul.f32 %v1224, 0.1
          %v1353 = vmul.f32 %v1225, 0.1
          %v1354 = vmul.f32 %v1226, 0.1
          %v1355 = vmul.f32 %v1227, 0.1
          %v1356 = vmul.f32 %v1228, 0.1
          %v1357 = vmul.f32 %v1229, 0.1
          %v1358 = vmul.f32 %v1230, 0.1
          %v1359 = vmul.f32 %v1231, 0.1
          %v1360 = vmul.f32 %v1232, 0.1
          %v1361 = vmul.f32 %v1233, 0.1
          %v1362 = vmul.f32 %v1234, 0.1
          %v1363 = vmul.f32 %v1235, 0.1
          %v1364 = vmul.f32 %v1236, 0.1
          %v1365 = vmul.f32 %v1237, 0.1
          %v1366 = vmul.f32 %v1238, 0.1
          %v1367 = vmul.f32 %v1239, 0.1
          %v1368 = vmul.f32 %v1240, 0.1
          %v1369 = vmul.f32 %v1241, 0.1
          %v1370 = vmul.f32 %v1242, 0.1
          %v1371 = vmul.f32 %v1243, 0.1
          %v1372 = vmul.f32 %v1244, 0.1
          %v1373 = vmul.f32 %v1245, 0.1
          %v1374 = vmul.f32 %v1246, 0.1
          %v1375 = vmul.f32 %v1247, 0.1
          %v1376 = vmul.f32 %v1248, 0.1
          %v1377 = vmul.f32 %v1249, 0.1
          %v1378 = vmul.f32 %v1250, 0.1
          %v1379 = vmul.f32 %v1251, 0.1
          %v1380 = vmul.f32 %v1252, 0.1
          %v1381 = vmul.f32 %v1253, 0.1
          %v1382 = vmul.f32 %v1254, 0.1
          %v1383 = vmul.f32 %v1255, 0.1
          %v1384 = vmul.f32 %v1256, 0.1
          %v1385 = vmul.f32 %v1257, 0.1
          %v1386 = vmul.f32 %v1258, 0.1
          %v1387 = vmul.f32 %v1259, 0.1
          %v1388 = vmul.f32 %v1260, 0.1
          %v1389 = vmul.f32 %v1261, 0.1
          %v1390 = vmul.f32 %v1262, 0.1
          %v1391 = vmul.f32 %v1263, 0.1
          %v1392 = vmul.f32 %v1264, 0.1
          %v1393 = vmul.f32 %v1265, 0.1
          %v1394 = vmul.f32 %v1266, 0.1
          %v1395 = vmul.f32 %v1267, 0.1
          %v1396 = vmul.f32 %v1268, 0.1
          %v1397 = vsel %vm1269, %v1205, %v1333
          %v1398 = vsel %vm1270, %v1206, %v1334
          %v1399 = vsel %vm1271, %v1207, %v1335
          %v1400 = vsel %vm1272, %v1208, %v1336
          %v1401 = vsel %vm1273, %v1209, %v1337
          %v1402 = vsel %vm1274, %v1210, %v1338
          %v1403 = vsel %vm1275, %v1211, %v1339
          %v1404 = vsel %vm1276, %v1212, %v1340
          %v1405 = vsel %vm1277, %v1213, %v1341
          %v1406 = vsel %vm1278, %v1214, %v1342
          %v1407 = vsel %vm1279, %v1215, %v1343
          %v1408 = vsel %vm1280, %v1216, %v1344
          %v1409 = vsel %vm1281, %v1217, %v1345
          %v1410 = vsel %vm1282, %v1218, %v1346
          %v1411 = vsel %vm1283, %v1219, %v1347
          %v1412 = vsel %vm1284, %v1220, %v1348
          %v1413 = vsel %vm1285, %v1221, %v1349
          %v1414 = vsel %vm1286, %v1222, %v1350
          %v1415 = vsel %vm1287, %v1223, %v1351
          %v1416 = vsel %vm1288, %v1224, %v1352
          %v1417 = vsel %vm1289, %v1225, %v1353
          %v1418 = vsel %vm1290, %v1226, %v1354
          %v1419 = vsel %vm1291, %v1227, %v1355
          %v1420 = vsel %vm1292, %v1228, %v1356
          %v1421 = vsel %vm1293, %v1229, %v1357
          %v1422 = vsel %vm1294, %v1230, %v1358
          %v1423 = vsel %vm1295, %v1231, %v1359
          %v1424 = vsel %vm1296, %v1232, %v1360
          %v1425 = vsel %vm1297, %v1233, %v1361
          %v1426 = vsel %vm1298, %v1234, %v1362
          %v1427 = vsel %vm1299, %v1235, %v1363
          %v1428 = vsel %vm1300, %v1236, %v1364
          %v1429 = vsel %vm1301, %v1237, %v1365
          %v1430 = vsel %vm1302, %v1238, %v1366
          %v1431 = vsel %vm1303, %v1239, %v1367
          %v1432 = vsel %vm1304, %v1240, %v1368
          %v1433 = vsel %vm1305, %v1241, %v1369
          %v1434 = vsel %vm1306, %v1242, %v1370
          %v1435 = vsel %vm1307, %v1243, %v1371
          %v1436 = vsel %vm1308, %v1244, %v1372
          %v1437 = vsel %vm1309, %v1245, %v1373
          %v1438 = vsel %vm1310, %v1246, %v1374
          %v1439 = vsel %vm1311, %v1247, %v1375
          %v1440 = vsel %vm1312, %v1248, %v1376
          %v1441 = vsel %vm1313, %v1249, %v1377
          %v1442 = vsel %vm1314, %v1250, %v1378
          %v1443 = vsel %vm1315, %v1251, %v1379
          %v1444 = vsel %vm1316, %v1252, %v1380
          %v1445 = vsel %vm1317, %v1253, %v1381
          %v1446 = vsel %vm1318, %v1254, %v1382
          %v1447 = vsel %vm1319, %v1255, %v1383
          %v1448 = vsel %vm1320, %v1256, %v1384
          %v1449 = vsel %vm1321, %v1257, %v1385
          %v1450 = vsel %vm1322, %v1258, %v1386
          %v1451 = vsel %vm1323, %v1259, %v1387
          %v1452 = vsel %vm1324, %v1260, %v1388
          %v1453 = vsel %vm1325, %v1261, %v1389
          %v1454 = vsel %vm1326, %v1262, %v1390
          %v1455 = vsel %vm1327, %v1263, %v1391
          %v1456 = vsel %vm1328, %v1264, %v1392
          %v1457 = vsel %vm1329, %v1265, %v1393
          %v1458 = vsel %vm1330, %v1266, %v1394
          %v1459 = vsel %vm1331, %v1267, %v1395
          %v1460 = vsel %vm1332, %v1268, %v1396
          %v1461 = vpack.c.bf16 %v1398, %v1397
          %v1462 = vpack.c.bf16 %v1400, %v1399
          %v1463 = vpack.c.bf16 %v1402, %v1401
          %v1464 = vpack.c.bf16 %v1404, %v1403
          %v1465 = vpack.c.bf16 %v1406, %v1405
          %v1466 = vpack.c.bf16 %v1408, %v1407
          %v1467 = vpack.c.bf16 %v1410, %v1409
          %v1468 = vpack.c.bf16 %v1412, %v1411
          %v1469 = vpack.c.bf16 %v1414, %v1413
          %v1470 = vpack.c.bf16 %v1416, %v1415
          %v1471 = vpack.c.bf16 %v1418, %v1417
          %v1472 = vpack.c.bf16 %v1420, %v1419
          %v1473 = vpack.c.bf16 %v1422, %v1421
          %v1474 = vpack.c.bf16 %v1424, %v1423
          %v1475 = vpack.c.bf16 %v1426, %v1425
          %v1476 = vpack.c.bf16 %v1428, %v1427
          %v1477 = vpack.c.bf16 %v1430, %v1429
          %v1478 = vpack.c.bf16 %v1432, %v1431
          %v1479 = vpack.c.bf16 %v1434, %v1433
          %v1480 = vpack.c.bf16 %v1436, %v1435
          %v1481 = vpack.c.bf16 %v1438, %v1437
          %v1482 = vpack.c.bf16 %v1440, %v1439
          %v1483 = vpack.c.bf16 %v1442, %v1441
          %v1484 = vpack.c.bf16 %v1444, %v1443
          %v1485 = vpack.c.bf16 %v1446, %v1445
          %v1486 = vpack.c.bf16 %v1448, %v1447
          %v1487 = vpack.c.bf16 %v1450, %v1449
          %v1488 = vpack.c.bf16 %v1452, %v1451
          %v1489 = vpack.c.bf16 %v1454, %v1453
          %v1490 = vpack.c.bf16 %v1456, %v1455
          %v1491 = vpack.c.bf16 %v1458, %v1457
          %v1492 = vpack.c.bf16 %v1460, %v1459
          %v1525 = vunpack.c.l.b16 %v1461
          %v1526 = vunpack.c.h.b16 %v1461
          %v1527 = vunpack.c.l.b16 %v1462
          %v1528 = vunpack.c.h.b16 %v1462
          %v1529 = vunpack.c.l.b16 %v1463
          %v1530 = vunpack.c.h.b16 %v1463
          %v1531 = vunpack.c.l.b16 %v1464
          %v1532 = vunpack.c.h.b16 %v1464
          %v1533 = vunpack.c.l.b16 %v1465
          %v1534 = vunpack.c.h.b16 %v1465
          %v1535 = vunpack.c.l.b16 %v1466
          %v1536 = vunpack.c.h.b16 %v1466
          %v1537 = vunpack.c.l.b16 %v1467
          %v1538 = vunpack.c.h.b16 %v1467
          %v1539 = vunpack.c.l.b16 %v1468
          %v1540 = vunpack.c.h.b16 %v1468
          %v1541 = vunpack.c.l.b16 %v1469
          %v1542 = vunpack.c.h.b16 %v1469
          %v1543 = vunpack.c.l.b16 %v1470
          %v1544 = vunpack.c.h.b16 %v1470
          %v1545 = vunpack.c.l.b16 %v1471
          %v1546 = vunpack.c.h.b16 %v1471
          %v1547 = vunpack.c.l.b16 %v1472
          %v1548 = vunpack.c.h.b16 %v1472
          %v1549 = vunpack.c.l.b16 %v1473
          %v1550 = vunpack.c.h.b16 %v1473
          %v1551 = vunpack.c.l.b16 %v1474
          %v1552 = vunpack.c.h.b16 %v1474
          %v1553 = vunpack.c.l.b16 %v1475
          %v1554 = vunpack.c.h.b16 %v1475
          %v1555 = vunpack.c.l.b16 %v1476
          %v1556 = vunpack.c.h.b16 %v1476
          %v1557 = vunpack.c.l.b16 %v1477
          %v1558 = vunpack.c.h.b16 %v1477
          %v1559 = vunpack.c.l.b16 %v1478
          %v1560 = vunpack.c.h.b16 %v1478
          %v1561 = vunpack.c.l.b16 %v1479
          %v1562 = vunpack.c.h.b16 %v1479
          %v1563 = vunpack.c.l.b16 %v1480
          %v1564 = vunpack.c.h.b16 %v1480
          %v1565 = vunpack.c.l.b16 %v1481
          %v1566 = vunpack.c.h.b16 %v1481
          %v1567 = vunpack.c.l.b16 %v1482
          %v1568 = vunpack.c.h.b16 %v1482
          %v1569 = vunpack.c.l.b16 %v1483
          %v1570 = vunpack.c.h.b16 %v1483
          %v1571 = vunpack.c.l.b16 %v1484
          %v1572 = vunpack.c.h.b16 %v1484
          %v1573 = vunpack.c.l.b16 %v1485
          %v1574 = vunpack.c.h.b16 %v1485
          %v1575 = vunpack.c.l.b16 %v1486
          %v1576 = vunpack.c.h.b16 %v1486
          %v1577 = vunpack.c.l.b16 %v1487
          %v1578 = vunpack.c.h.b16 %v1487
          %v1579 = vunpack.c.l.b16 %v1488
          %v1580 = vunpack.c.h.b16 %v1488
          %v1581 = vunpack.c.l.b16 %v1489
          %v1582 = vunpack.c.h.b16 %v1489
          %v1583 = vunpack.c.l.b16 %v1490
          %v1584 = vunpack.c.h.b16 %v1490
          %v1585 = vunpack.c.l.b16 %v1491
          %v1586 = vunpack.c.h.b16 %v1491
          %v1587 = vunpack.c.l.b16 %v1492
          %v1588 = vunpack.c.h.b16 %v1492
          %v1589 = vpack.c.b16 %v1525, %v1525
          %v1590 = vpack.c.b16 %v1526, %v1526
          %v1591 = vpack.c.b16 %v1527, %v1527
          %v1592 = vpack.c.b16 %v1528, %v1528
          %v1593 = vpack.c.b16 %v1529, %v1529
          %v1594 = vpack.c.b16 %v1530, %v1530
          %v1595 = vpack.c.b16 %v1531, %v1531
          %v1596 = vpack.c.b16 %v1532, %v1532
          %v1597 = vpack.c.b16 %v1533, %v1533
          %v1598 = vpack.c.b16 %v1534, %v1534
          %v1599 = vpack.c.b16 %v1535, %v1535
          %v1600 = vpack.c.b16 %v1536, %v1536
          %v1601 = vpack.c.b16 %v1537, %v1537
          %v1602 = vpack.c.b16 %v1538, %v1538
          %v1603 = vpack.c.b16 %v1539, %v1539
          %v1604 = vpack.c.b16 %v1540, %v1540
          %v1605 = vpack.c.b16 %v1541, %v1541
          %v1606 = vpack.c.b16 %v1542, %v1542
          %v1607 = vpack.c.b16 %v1543, %v1543
          %v1608 = vpack.c.b16 %v1544, %v1544
          %v1609 = vpack.c.b16 %v1545, %v1545
          %v1610 = vpack.c.b16 %v1546, %v1546
          %v1611 = vpack.c.b16 %v1547, %v1547
          %v1612 = vpack.c.b16 %v1548, %v1548
          %v1613 = vpack.c.b16 %v1549, %v1549
          %v1614 = vpack.c.b16 %v1550, %v1550
          %v1615 = vpack.c.b16 %v1551, %v1551
          %v1616 = vpack.c.b16 %v1552, %v1552
          %v1617 = vpack.c.b16 %v1553, %v1553
          %v1618 = vpack.c.b16 %v1554, %v1554
          %v1619 = vpack.c.b16 %v1555, %v1555
          %v1620 = vpack.c.b16 %v1556, %v1556
          %v1621 = vpack.c.b16 %v1557, %v1557
          %v1622 = vpack.c.b16 %v1558, %v1558
          %v1623 = vpack.c.b16 %v1559, %v1559
          %v1624 = vpack.c.b16 %v1560, %v1560
          %v1625 = vpack.c.b16 %v1561, %v1561
          %v1626 = vpack.c.b16 %v1562, %v1562
          %v1627 = vpack.c.b16 %v1563, %v1563
          %v1628 = vpack.c.b16 %v1564, %v1564
          %v1629 = vpack.c.b16 %v1565, %v1565
          %v1630 = vpack.c.b16 %v1566, %v1566
          %v1631 = vpack.c.b16 %v1567, %v1567
          %v1632 = vpack.c.b16 %v1568, %v1568
          %v1633 = vpack.c.b16 %v1569, %v1569
          %v1634 = vpack.c.b16 %v1570, %v1570
          %v1635 = vpack.c.b16 %v1571, %v1571
          %v1636 = vpack.c.b16 %v1572, %v1572
          %v1637 = vpack.c.b16 %v1573, %v1573
          %v1638 = vpack.c.b16 %v1574, %v1574
          %v1639 = vpack.c.b16 %v1575, %v1575
          %v1640 = vpack.c.b16 %v1576, %v1576
          %v1641 = vpack.c.b16 %v1577, %v1577
          %v1642 = vpack.c.b16 %v1578, %v1578
          %v1643 = vpack.c.b16 %v1579, %v1579
          %v1644 = vpack.c.b16 %v1580, %v1580
          %v1645 = vpack.c.b16 %v1581, %v1581
          %v1646 = vpack.c.b16 %v1582, %v1582
          %v1647 = vpack.c.b16 %v1583, %v1583
          %v1648 = vpack.c.b16 %v1584, %v1584
          %v1649 = vpack.c.b16 %v1585, %v1585
          %v1650 = vpack.c.b16 %v1586, %v1586
          %v1651 = vpack.c.b16 %v1587, %v1587
          %v1652 = vpack.c.b16 %v1588, %v1588
          %1717 = vst [vmem:[%s257] sm:$0xf] %v1589
          %1718 = vst [vmem:[%s257 + $0x4] sm:$0xf] %v1590
          %1719 = vst [vmem:[%s257 + $0x8] sm:$0xf] %v1591
          %1720 = vst [vmem:[%s257 + $0xc] sm:$0xf] %v1592
          %1721 = vst [vmem:[%s257 + $0x10] sm:$0xf] %v1593
          %1722 = vst [vmem:[%s257 + $0x14] sm:$0xf] %v1594
          %1723 = vst [vmem:[%s257 + $0x18] sm:$0xf] %v1595
          %1724 = vst [vmem:[%s257 + $0x1c] sm:$0xf] %v1596
          %1725 = vst [vmem:[%s257 + $0x20] sm:$0xf] %v1597
          %1726 = vst [vmem:[%s257 + $0x24] sm:$0xf] %v1598
          %1727 = vst [vmem:[%s257 + $0x28] sm:$0xf] %v1599
          %1728 = vst [vmem:[%s257 + $0x2c] sm:$0xf] %v1600
          %1729 = vst [vmem:[%s257 + $0x30] sm:$0xf] %v1601
          %1730 = vst [vmem:[%s257 + $0x34] sm:$0xf] %v1602
          %1731 = vst [vmem:[%s257 + $0x38] sm:$0xf] %v1603
          %1732 = vst [vmem:[%s257 + $0x3c] sm:$0xf] %v1604
          %1733 = vst [vmem:[%s257 + $0x40] sm:$0xf] %v1605
          %1734 = vst [vmem:[%s257 + $0x44] sm:$0xf] %v1606
          %1735 = vst [vmem:[%s257 + $0x48] sm:$0xf] %v1607
          %1736 = vst [vmem:[%s257 + $0x4c] sm:$0xf] %v1608
          %1737 = vst [vmem:[%s257 + $0x50] sm:$0xf] %v1609
          %1738 = vst [vmem:[%s257 + $0x54] sm:$0xf] %v1610
          %1739 = vst [vmem:[%s257 + $0x58] sm:$0xf] %v1611
          %1740 = vst [vmem:[%s257 + $0x5c] sm:$0xf] %v1612
          %1741 = vst [vmem:[%s257 + $0x60] sm:$0xf] %v1613
          %1742 = vst [vmem:[%s257 + $0x64] sm:$0xf] %v1614
          %1743 = vst [vmem:[%s257 + $0x68] sm:$0xf] %v1615
          %1744 = vst [vmem:[%s257 + $0x6c] sm:$0xf] %v1616
          %1745 = vst [vmem:[%s257 + $0x70] sm:$0xf] %v1617
          %1746 = vst [vmem:[%s257 + $0x74] sm:$0xf] %v1618
          %1747 = vst [vmem:[%s257 + $0x78] sm:$0xf] %v1619
          %1748 = vst [vmem:[%s257 + $0x7c] sm:$0xf] %v1620
          %1749 = vst [vmem:[%s257 + $0x80] sm:$0xf] %v1621
          %1750 = vst [vmem:[%s257 + $0x84] sm:$0xf] %v1622
          %1751 = vst [vmem:[%s257 + $0x88] sm:$0xf] %v1623
          %1752 = vst [vmem:[%s257 + $0x8c] sm:$0xf] %v1624
          %1753 = vst [vmem:[%s257 + $0x90] sm:$0xf] %v1625
          %1754 = vst [vmem:[%s257 + $0x94] sm:$0xf] %v1626
          %1755 = vst [vmem:[%s257 + $0x98] sm:$0xf] %v1627
          %1756 = vst [vmem:[%s257 + $0x9c] sm:$0xf] %v1628
          %1757 = vst [vmem:[%s257 + $0xa0] sm:$0xf] %v1629
          %1758 = vst [vmem:[%s257 + $0xa4] sm:$0xf] %v1630
          %1759 = vst [vmem:[%s257 + $0xa8] sm:$0xf] %v1631
          %1760 = vst [vmem:[%s257 + $0xac] sm:$0xf] %v1632
          %1761 = vst [vmem:[%s257 + $0xb0] sm:$0xf] %v1633
          %1762 = vst [vmem:[%s257 + $0xb4] sm:$0xf] %v1634
          %1763 = vst [vmem:[%s257 + $0xb8] sm:$0xf] %v1635
          %1764 = vst [vmem:[%s257 + $0xbc] sm:$0xf] %v1636
          %1765 = vst [vmem:[%s257 + $0xc0] sm:$0xf] %v1637
          %1766 = vst [vmem:[%s257 + $0xc4] sm:$0xf] %v1638
          %1767 = vst [vmem:[%s257 + $0xc8] sm:$0xf] %v1639
          %1768 = vst [vmem:[%s257 + $0xcc] sm:$0xf] %v1640
          %1769 = vst [vmem:[%s257 + $0xd0] sm:$0xf] %v1641
          %1770 = vst [vmem:[%s257 + $0xd4] sm:$0xf] %v1642
          %1771 = vst [vmem:[%s257 + $0xd8] sm:$0xf] %v1643
          %1772 = vst [vmem:[%s257 + $0xdc] sm:$0xf] %v1644
          %1773 = vst [vmem:[%s257 + $0xe0] sm:$0xf] %v1645
          %1774 = vst [vmem:[%s257 + $0xe4] sm:$0xf] %v1646
          %1775 = vst [vmem:[%s257 + $0xe8] sm:$0xf] %v1647
          %1776 = vst [vmem:[%s257 + $0xec] sm:$0xf] %v1648
          %1777 = vst [vmem:[%s257 + $0xf0] sm:$0xf] %v1649
          %1778 = vst [vmem:[%s257 + $0xf4] sm:$0xf] %v1650
          %1779 = vst [vmem:[%s257 + $0xf8] sm:$0xf] %v1651
          %1780 = vst [vmem:[%s257 + $0xfc] sm:$0xf] %v1652
        $region52: #{tpu_custom_call.1} parent=31 // pred_fallthru
          _
        %s1781 = sand.u32 %s132, 1
        %s1782 = scalar_lea.sflag [#allocation5], %s1781
        %s1783 = sand.u32 %s132, 1
        %s1784 = smul.addr %s1783, 256
        %s1785 = scalar_lea.vmem [#allocation9], %s1784
        // Predicated region
        $region53: #{tpu_custom_call.1} parent=31 // pred_check
          %p1786 = pneg %p142
        $region54: #{tpu_custom_call.1} parent=31 // pred_check_branch
          %1788 = sbr.rel (%p1786) target = $region56
        $region55: #{tpu_custom_call.1} parent=31 // pred_region
          %s1789 = smul.u32 64, %s26
          %s1791 = ssub.s32 4096, 4096
          %1792 = vsyncadd %s1782, %s1791
          %s1793 = sadd.s32 %s27, %s1789
          %s1794 = smul.addr %s1793, 64
          %s1795 = scalar_lea.hbm %s3, %s1794
          %s1796 = sshll.u32 %s1785, 4
          %s1797 = int_to_ptr.vmem [resolvable:$true] %s1796
          %1802 = dma.vmem_to_hbm [thread:$0]  %s1797, 4096, %s1795, %s1782, 64, 64, 4
        $region56: #{tpu_custom_call.1} parent=31 // pred_fallthru
          _
      $region32: #{tpu_custom_call.1} parent=5 // pred_fallthru
        _
      %p1803 = scmp.le.s32.totalorder 2, %s16
      // Predicated region
      $region57: #{tpu_custom_call.1} parent=5 // pred_check
        %p1804 = pneg %p1803
      $region58: #{tpu_custom_call.1} parent=5 // pred_check_branch
        %1806 = sbr.rel (%p1804) target = $region60
      $region59: #{tpu_custom_call.1} parent=5 // pred_region
        %s1807 = ssub.s32 %s16, 2
        // Predicated region
        $region61: #{tpu_custom_call.1} parent=59 // pred_check
          %p1808 = pneg %p148
        $region62: #{tpu_custom_call.1} parent=59 // pred_check_branch
          %1810 = sbr.rel (%p1808) target = $region64
        $region63: #{tpu_custom_call.1} parent=59 // pred_region
          %s1811 = sand.u32 %s133, 1
          %s1812 = scalar_lea.sflag [#allocation5], %s1811
          %s1813 = sand.u32 %s133, 1
          %s1814 = smul.addr %s1813, 256
          %s1815 = scalar_lea.vmem [#allocation9], %s1814
          %1816 = dma.done %s1812, 4096
        $region64: #{tpu_custom_call.1} parent=59 // pred_fallthru
          _
      $region60: #{tpu_custom_call.1} parent=5 // pred_fallthru
        _
    $region6: #{tpu_custom_call.1} parent=1 // loop_footer
      %s20 = sadd.s32 1, %s16
    $region7: #{tpu_custom_call.1} parent=1 // loop_footer_branch
      %15 = sbr.rel target = $region3
    $region8: #{tpu_custom_call.1} parent=1 // loop_exit
      _
    %1817 = vsyncpa [#allocation4], 1
    %s1818 = scalar_lea.sflag [#allocation4], 1
    %1819 = vsyncpa %s1818, 1
    %1820 = vsyncpa [#allocation7], 1
    %1821 = vsyncpa [#allocation5], 1
    %s1822 = scalar_lea.sflag [#allocation5], 1
    %1823 = vsyncpa %s1822, 1

</llo_original>
